<compile_context>
chip_gen: v5e
topology: v5e:2x2
jax: 0.10.0
libtpu: 0.0.40
codegen_flags: <defaults>
</compile_context>

<pallas_src>
import functools

import jax
import jax.numpy as jnp
from jax.experimental import pallas as pl
from jax.experimental.pallas import tpu as pltpu

LANE = 128  # TPU lane width; every gate / output slab is padded to this.


# ---------------------------------------------------------------------------
# Pallas kernel: whole sequence in one invocation
# ---------------------------------------------------------------------------
def actor_rnn_seq_kernel(x_ref, h0_ref,
                         w1_ref, b1_ref,
                         wgx_ref, bgx_ref,
                         wgh_ref, bgh_ref,
                         w2_ref, b2_ref,
                         prob_ref, h_ref,
                         gx_sc, hseq_sc,
                         *, use_relu, seq_len, batch):
    bf16 = jnp.bfloat16

    # ---- input path, batched over all T*B rows (no recurrence) -------------
    x = x_ref[...].astype(bf16)                                  # (T*B, D_in)
    a1 = jnp.dot(x, w1_ref[...],
                 preferred_element_type=jnp.float32) + b1_ref[...]
    if use_relu:
        xa = jnp.maximum(a1, 0.0)                                # (T*B, 128)
    else:
        xa = jnp.tanh(a1)
    # x-side GRU pre-activations for every time step at once:
    #   slabs (128 lanes each): [r_x | z_x | n_x], r/z biases pre-folded.
    gx_sc[...] = jnp.dot(xa.astype(bf16), wgx_ref[...],
                         preferred_element_type=jnp.float32) + bgx_ref[...]

    # ---- serial GRU recurrence: only h @ Wgh + gating per step -------------
    # bgh is only nonzero in the n slab (b_hn sits inside the r*(...) term).
    bgh = jnp.broadcast_to(bgh_ref[...], (batch, 3 * LANE))      # hoisted bcast
    h = h0_ref[...]                                              # (B, 128) f32
    for t in range(seq_len):  # static T -> fully unrolled, all slices static
        gxt = gx_sc[pl.ds(t * batch, batch), :]                  # (B, 384)
        gh = jnp.dot(h.astype(bf16), wgh_ref[...],
                     preferred_element_type=jnp.float32) + bgh   # (B, 384)
        r = jax.nn.sigmoid(gxt[:, 0:LANE] + gh[:, 0:LANE])
        z = jax.nn.sigmoid(gxt[:, LANE:2 * LANE] + gh[:, LANE:2 * LANE])
        n = jnp.tanh(gxt[:, 2 * LANE:3 * LANE] + r * gh[:, 2 * LANE:3 * LANE])
        h = (1.0 - z) * n + z * h                                # padded lanes stay 0
        hseq_sc[pl.ds(t * batch, batch), :] = h
    h_ref[...] = h.astype(h_ref.dtype)

    # ---- output path, batched over all T*B rows ------------------------------
    hs = hseq_sc[...]                                            # (T*B, 128)
    logits = jnp.dot(hs.astype(bf16), w2_ref[...],
                     preferred_element_type=jnp.float32) + b2_ref[...]
    m = jnp.max(logits, axis=-1, keepdims=True)
    e = jnp.exp(logits - m)                                      # padded lanes -> 0
    s = jnp.sum(e, axis=-1, keepdims=True)
    prob_ref[...] = (e / s).astype(prob_ref.dtype)               # exact normalization


# ---------------------------------------------------------------------------
# Wrappers
# ---------------------------------------------------------------------------
def actor_rnn_sequence(x_seq, h0_pad, packed, *, use_relu=True):
    """Run T GRU steps in a single grid-less pallas_call.

    x_seq:  (T, B, D_in) float32
    h0_pad: (B, 128)     float32, lanes H:128 MUST be zero (documented invariant)
    returns (prob_pad (T, B, 128) f32, h_final_pad (B, 128) f32)
    """
    T, B, D_in = x_seq.shape
    assert h0_pad.shape == (B, LANE)
    x_flat = x_seq.reshape(T * B, D_in)

    kernel = functools.partial(actor_rnn_seq_kernel,
                               use_relu=use_relu, seq_len=T, batch=B)

    def vmem():
        return pl.BlockSpec(memory_space=pltpu.MemorySpace.VMEM)

    prob_flat, h_pad = pl.pallas_call(
        kernel,
        out_shape=(jax.ShapeDtypeStruct((T * B, LANE), jnp.float32),
                   jax.ShapeDtypeStruct((B, LANE), jnp.float32)),
        in_specs=[vmem() for _ in range(10)],
        out_specs=(vmem(), vmem()),
        scratch_shapes=[
            pltpu.VMEM((T * B, 3 * LANE), jnp.float32),   # x-side gate pre-acts
            pltpu.VMEM((T * B, LANE), jnp.float32),       # per-step hidden states
        ],
    )(x_flat, h0_pad,
      packed["w1p"], packed["b1p"],
      packed["wgx"], packed["bgx"],
      packed["wgh"], packed["bgh"],
      packed["w2p"], packed["b2p"])
    return prob_flat.reshape(T, B, LANE), h_pad


def actor_rnn_step(x, h_pad, packed, *, use_relu=True):
    """Equivalent of one PyTorch Actor_RNN.forward() call (T = 1)."""
    prob_pad, h_new_pad = actor_rnn_sequence(x[None], h_pad, packed,
                                             use_relu=use_relu)
    return prob_pad[0], h_new_pad


# ---------------------------------------------------------------------------
# Parameter init (orthogonal, like the PyTorch module) and host-side packing
# ---------------------------------------------------------------------------
def orthogonal(key, rows, cols, gain=1.0):
    a = jax.random.normal(key, (max(rows, cols), min(rows, cols)), dtype=jnp.float32)
    q, r = jnp.linalg.qr(a)
    q = q * jnp.sign(jnp.diagonal(r))[None, :]
    if rows < cols:
        q = q.T
    return gain * q[:rows, :cols]


def init_params(key, actor_input_dim, hidden_dim, action_dim):
    """PyTorch-equivalent parameters, stored transposed ([in, out])."""
    ks = jax.random.split(key, 4)
    w1 = orthogonal(ks[0], hidden_dim, actor_input_dim).T            # (D_in, H)
    b1 = jnp.zeros((1, hidden_dim), jnp.float32)
    wih = orthogonal(ks[1], 3 * hidden_dim, hidden_dim).T            # (H, 3H) [r|z|n]
    bih = jnp.zeros((1, 3 * hidden_dim), jnp.float32)
    whh = orthogonal(ks[2], 3 * hidden_dim, hidden_dim).T            # (H, 3H) [r|z|n]
    bhh = jnp.zeros((1, 3 * hidden_dim), jnp.float32)
    w2 = orthogonal(ks[3], action_dim, hidden_dim, gain=0.01).T      # (H, A)
    b2 = jnp.zeros((1, action_dim), jnp.float32)
    return dict(w1=w1, b1=b1, wih=wih, bih=bih, whh=whh, bhh=bhh, w2=w2, b2=b2)


def pack_params(p, *, lane=LANE):
    """Pad / split / fuse the weights into the lane-aligned layout the kernel expects.

    Matmul weights are stored bf16 (MXU operands); biases stay f32.
    """
    D_in, H = p["w1"].shape
    A = p["w2"].shape[1]
    assert H <= lane and A <= lane
    f32, bf16 = jnp.float32, jnp.bfloat16

    # fc1: output padded to 128 lanes (zeros beyond H -> xa padded lanes == 0)
    w1p = jnp.zeros((D_in, lane), f32).at[:, :H].set(p["w1"]).astype(bf16)
    b1p = jnp.zeros((1, lane), f32).at[:, :H].set(p["b1"])

    wih, whh = p["wih"], p["whh"]
    # x-path GRU weight: slabs (128 lanes each) [r_x | z_x | n_x]
    wgx = jnp.zeros((lane, 3 * lane), f32)
    wgx = wgx.at[:H, 0:H].set(wih[:, 0:H])
    wgx = wgx.at[:H, lane:lane + H].set(wih[:, H:2 * H])
    wgx = wgx.at[:H, 2 * lane:2 * lane + H].set(wih[:, 2 * H:3 * H])
    wgx = wgx.astype(bf16)
    # h-path GRU weight: slabs [r_h | z_h | n_h]
    wgh = jnp.zeros((lane, 3 * lane), f32)
    wgh = wgh.at[:H, 0:H].set(whh[:, 0:H])
    wgh = wgh.at[:H, lane:lane + H].set(whh[:, H:2 * H])
    wgh = wgh.at[:H, 2 * lane:2 * lane + H].set(whh[:, 2 * H:3 * H])
    wgh = wgh.astype(bf16)

    bih, bhh = p["bih"][0], p["bhh"][0]
    # x-path bias: r/z biases folded (bih+bhh); n slab gets bih_n only.
    bgx = jnp.zeros((1, 3 * lane), f32)
    bgx = bgx.at[0, 0:H].set(bih[0:H] + bhh[0:H])
    bgx = bgx.at[0, lane:lane + H].set(bih[H:2 * H] + bhh[H:2 * H])
    bgx = bgx.at[0, 2 * lane:2 * lane + H].set(bih[2 * H:3 * H])
    # h-path bias: only the n slab (bhh_n lives inside the r*(...) term).
    bgh = jnp.zeros((1, 3 * lane), f32)
    bgh = bgh.at[0, 2 * lane:2 * lane + H].set(bhh[2 * H:3 * H])

    # fc2: 128x128 padded; padded logit lanes get -1e9 (f32) so softmax zeroes them
    w2p = jnp.zeros((lane, lane), f32).at[:H, :A].set(p["w2"]).astype(bf16)
    b2p = jnp.full((1, lane), -1e9, f32).at[0, :A].set(p["b2"][0])

    return dict(w1p=w1p, b1p=b1p, wgx=wgx, bgx=bgx, wgh=wgh, bgh=bgh,
                w2p=w2p, b2p=b2p)


# ---------------------------------------------------------------------------
# Pure-JAX reference (mirrors torch semantics; matmul operand dtype selectable)
# ---------------------------------------------------------------------------
def reference_step(x, h, p, use_relu=True, matmul_dtype=jnp.float32):
    def mm(a, w):
        return jnp.dot(a.astype(matmul_dtype), w.astype(matmul_dtype),
                       preferred_element_type=jnp.float32)
    a1 = mm(x, p["w1"]) + p["b1"]
    xa = jnp.maximum(a1, 0.0) if use_relu else jnp.tanh(a1)
    gi = mm(xa, p["wih"]) + p["bih"]
    gh = mm(h, p["whh"]) + p["bhh"]
    H = h.shape[1]
    r = jax.nn.sigmoid(gi[:, :H] + gh[:, :H])
    z = jax.nn.sigmoid(gi[:, H:2 * H] + gh[:, H:2 * H])
    n = jnp.tanh(gi[:, 2 * H:] + r * gh[:, 2 * H:])
    h_new = (1 - z) * n + z * h
    logits = mm(h_new, p["w2"]) + p["b2"]
    return jax.nn.softmax(logits, axis=-1), h_new


def reference_sequence(x_seq, h0, p, use_relu=True, matmul_dtype=jnp.float32):
    probs, h = [], h0
    for t in range(x_seq.shape[0]):
        prob, h = reference_step(x_seq[t], h, p, use_relu, matmul_dtype)
        probs.append(prob)
    return jnp.stack(probs), h


# ---------------------------------------------------------------------------
if __name__ == "__main__":
    # batch=8 agents, obs=16, rnn_hidden=32, actions=8, 8 forward() calls,
    # use_relu=1, orthogonal init.
    T, B, D_IN, H, A = 8, 8, 16, 32, 8
    key = jax.random.PRNGKey(0)
    k_x, k_p = jax.random.split(key)

    x_seq = jax.random.normal(k_x, (T, B, D_IN), dtype=jnp.float32)
    params = init_params(k_p, D_IN, H, A)
    packed = pack_params(params)
    h0_pad = jnp.zeros((B, LANE), jnp.float32)   # self.rnn_hidden is None -> zeros
    h0 = jnp.zeros((B, H), jnp.float32)

    # Whole sequence in one kernel invocation.
    prob_pad, h_pad = actor_rnn_sequence(x_seq, h0_pad, packed, use_relu=True)
    jax.block_until_ready((prob_pad, h_pad))

    prob = prob_pad[:, :, :A]
    h_fin = h_pad[:, :H]

    # Tight check vs. a reference that also uses bf16 MXU operands.
    prob_bf, h_bf = reference_sequence(x_seq, h0, params, use_relu=True,
                                       matmul_dtype=jnp.bfloat16)
    assert jnp.allclose(prob, prob_bf, atol=1e-3, rtol=1e-3), "prob mismatch (bf16 ref)"
    assert jnp.allclose(h_fin, h_bf, atol=1e-3, rtol=1e-3), "hidden mismatch (bf16 ref)"

    # Looser semantic check vs. the full-f32 torch-equivalent reference.
    prob_f, h_f = reference_sequence(x_seq, h0, params, use_relu=True,
                                     matmul_dtype=jnp.float32)
    assert jnp.allclose(prob, prob_f, atol=2e-2, rtol=2e-2), "prob mismatch (f32 ref)"
    assert jnp.allclose(h_fin, h_f, atol=3e-2, rtol=3e-2), "hidden mismatch (f32 ref)"

    assert jnp.allclose(jnp.sum(prob, axis=-1), 1.0, atol=1e-4), "softmax not normalized"
    assert jnp.allclose(h_pad[:, H:], 0.0, atol=1e-6), "hidden padding drifted"

    # Single-step API (one PyTorch forward() call) built on the same kernel.
    prob1_pad, h1_pad = actor_rnn_step(x_seq[0], h0_pad, packed, use_relu=True)
    jax.block_until_ready((prob1_pad, h1_pad))
    p1_ref, h1_ref = reference_step(x_seq[0], h0, params,
                                    use_relu=True, matmul_dtype=jnp.bfloat16)
    assert jnp.allclose(prob1_pad[:, :A], p1_ref, atol=1e-3, rtol=1e-3)
    assert jnp.allclose(h1_pad[:, :H], h1_ref, atol=1e-3, rtol=1e-3)

    print("KERNEL_OK")
</pallas_src>

<mosaic_0001>
module attributes {stable_mosaic.version = 11 : i64} {
  func.func @actor_rnn_seq_kernel(%arg0: memref<64x16xf32, #tpu.memory_space<vmem>>, %arg1: memref<8x128xf32, #tpu.memory_space<vmem>>, %arg2: memref<16x128xbf16, #tpu.memory_space<vmem>>, %arg3: memref<1x128xf32, #tpu.memory_space<vmem>>, %arg4: memref<128x384xbf16, #tpu.memory_space<vmem>>, %arg5: memref<1x384xf32, #tpu.memory_space<vmem>>, %arg6: memref<128x384xbf16, #tpu.memory_space<vmem>>, %arg7: memref<1x384xf32, #tpu.memory_space<vmem>>, %arg8: memref<128x128xbf16, #tpu.memory_space<vmem>>, %arg9: memref<1x128xf32, #tpu.memory_space<vmem>>, %arg10: memref<64x128xf32, #tpu.memory_space<vmem>>, %arg11: memref<8x128xf32, #tpu.memory_space<vmem>>, %arg12: memref<64x384xf32, #tpu.memory_space<vmem>>, %arg13: memref<64x128xf32, #tpu.memory_space<vmem>>) attributes {dimension_semantics = [], scalar_prefetch = 0 : i64, scratch_operands = 2 : i64, tpu.core_type = #tpu.core_type<tc>} {
    %c0 = arith.constant 0 : index
    %c0_0 = arith.constant 0 : index
    %0 = vector.load %arg0[%c0, %c0_0] : memref<64x16xf32, #tpu.memory_space<vmem>>, vector<64x16xf32>
    %1 = arith.truncf %0 : vector<64x16xf32> to vector<64x16xbf16>
    %c0_1 = arith.constant 0 : index
    %c0_2 = arith.constant 0 : index
    %2 = vector.load %arg2[%c0_1, %c0_2] : memref<16x128xbf16, #tpu.memory_space<vmem>>, vector<16x128xbf16>
    %cst = arith.constant dense<0.000000e+00> : vector<64x128xf32>
    %3 = tpu.matmul %1, %2, %cst {dimension_numbers = #tpu.dot_dimension_numbers<[1], [0], [0], [1], [0, 0, 1, 1], [], []>} : vector<64x16xbf16>, vector<16x128xbf16>, vector<64x128xf32> -> vector<64x128xf32>
    %c0_3 = arith.constant 0 : index
    %c0_4 = arith.constant 0 : index
    %4 = vector.load %arg3[%c0_3, %c0_4] : memref<1x128xf32, #tpu.memory_space<vmem>>, vector<1x128xf32>
    %5 = vector.broadcast %4 : vector<1x128xf32> to vector<64x128xf32>
    %6 = arith.addf %3, %5 : vector<64x128xf32>
    %cst_5 = arith.constant 0.000000e+00 : f32
    %7 = vector.broadcast %cst_5 : f32 to vector<64x128xf32>
    %8 = arith.maximumf %6, %7 : vector<64x128xf32>
    %9 = arith.truncf %8 : vector<64x128xf32> to vector<64x128xbf16>
    %c0_6 = arith.constant 0 : index
    %c0_7 = arith.constant 0 : index
    %10 = vector.load %arg4[%c0_6, %c0_7] : memref<128x384xbf16, #tpu.memory_space<vmem>>, vector<128x384xbf16>
    %cst_8 = arith.constant dense<0.000000e+00> : vector<64x384xf32>
    %11 = tpu.matmul %9, %10, %cst_8 {dimension_numbers = #tpu.dot_dimension_numbers<[1], [0], [0], [1], [0, 0, 1, 1], [], []>} : vector<64x128xbf16>, vector<128x384xbf16>, vector<64x384xf32> -> vector<64x384xf32>
    %c0_9 = arith.constant 0 : index
    %c0_10 = arith.constant 0 : index
    %12 = vector.load %arg5[%c0_9, %c0_10] : memref<1x384xf32, #tpu.memory_space<vmem>>, vector<1x384xf32>
    %13 = vector.broadcast %12 : vector<1x384xf32> to vector<64x384xf32>
    %14 = arith.addf %11, %13 : vector<64x384xf32>
    %c0_11 = arith.constant 0 : index
    %c0_12 = arith.constant 0 : index
    %15 = vector.load %arg12[%c0_11, %c0_12] : memref<64x384xf32, #tpu.memory_space<vmem>>, vector<64x384xf32>
    tpu.vector_store %arg12[%c0_11, %c0_12], %14 {strides = array<i32>} : memref<64x384xf32, #tpu.memory_space<vmem>>, vector<64x384xf32>,
    %c0_13 = arith.constant 0 : index
    %c0_14 = arith.constant 0 : index
    %16 = vector.load %arg7[%c0_13, %c0_14] : memref<1x384xf32, #tpu.memory_space<vmem>>, vector<1x384xf32>
    %17 = vector.shape_cast %16 : vector<1x384xf32> to vector<1x384xf32>
    %18 = vector.broadcast %17 : vector<1x384xf32> to vector<8x384xf32>
    %c0_15 = arith.constant 0 : index
    %c0_16 = arith.constant 0 : index
    %19 = vector.load %arg1[%c0_15, %c0_16] : memref<8x128xf32, #tpu.memory_space<vmem>>, vector<8x128xf32>
    %c0_17 = arith.constant 0 : index
    %c0_18 = arith.constant 0 : index
    %20 = vector.load %arg12[%c0_17, %c0_18] : memref<64x384xf32, #tpu.memory_space<vmem>>, vector<8x384xf32>
    %21 = arith.truncf %19 : vector<8x128xf32> to vector<8x128xbf16>
    %c0_19 = arith.constant 0 : index
    %c0_20 = arith.constant 0 : index
    %22 = vector.load %arg6[%c0_19, %c0_20] : memref<128x384xbf16, #tpu.memory_space<vmem>>, vector<128x384xbf16>
    %cst_21 = arith.constant dense<0.000000e+00> : vector<8x384xf32>
    %23 = tpu.matmul %21, %22, %cst_21 {dimension_numbers = #tpu.dot_dimension_numbers<[1], [0], [0], [1], [0, 0, 1, 1], [], []>} : vector<8x128xbf16>, vector<128x384xbf16>, vector<8x384xf32> -> vector<8x384xf32>
    %24 = arith.addf %23, %18 : vector<8x384xf32>
    %25 = vector.extract_strided_slice %20 {offsets = [0, 0], sizes = [8, 128], strides = [1, 1]} : vector<8x384xf32> to vector<8x128xf32>
    %26 = vector.extract_strided_slice %24 {offsets = [0, 0], sizes = [8, 128], strides = [1, 1]} : vector<8x384xf32> to vector<8x128xf32>
    %27 = arith.addf %25, %26 : vector<8x128xf32>
    %28 = arith.negf %27 : vector<8x128xf32>
    %29 = math.exp %28 : vector<8x128xf32>
    %cst_22 = arith.constant 1.000000e+00 : f32
    %30 = vector.broadcast %cst_22 : f32 to vector<8x128xf32>
    %31 = arith.addf %30, %29 : vector<8x128xf32>
    %32 = arith.divf %30, %31 : vector<8x128xf32>
    %33 = vector.extract_strided_slice %20 {offsets = [0, 128], sizes = [8, 128], strides = [1, 1]} : vector<8x384xf32> to vector<8x128xf32>
    %34 = vector.extract_strided_slice %24 {offsets = [0, 128], sizes = [8, 128], strides = [1, 1]} : vector<8x384xf32> to vector<8x128xf32>
    %35 = arith.addf %33, %34 : vector<8x128xf32>
    %36 = arith.negf %35 : vector<8x128xf32>
    %37 = math.exp %36 : vector<8x128xf32>
    %cst_23 = arith.constant 1.000000e+00 : f32
    %38 = vector.broadcast %cst_23 : f32 to vector<8x128xf32>
    %39 = arith.addf %38, %37 : vector<8x128xf32>
    %40 = arith.divf %38, %39 : vector<8x128xf32>
    %41 = vector.extract_strided_slice %20 {offsets = [0, 256], sizes = [8, 128], strides = [1, 1]} : vector<8x384xf32> to vector<8x128xf32>
    %42 = vector.extract_strided_slice %24 {offsets = [0, 256], sizes = [8, 128], strides = [1, 1]} : vector<8x384xf32> to vector<8x128xf32>
    %43 = arith.mulf %32, %42 : vector<8x128xf32>
    %44 = arith.addf %41, %43 : vector<8x128xf32>
    %45 = math.tanh %44 : vector<8x128xf32>
    %cst_24 = arith.constant 1.000000e+00 : f32
    %46 = vector.broadcast %cst_24 : f32 to vector<8x128xf32>
    %47 = arith.subf %46, %40 : vector<8x128xf32>
    %48 = arith.mulf %47, %45 : vector<8x128xf32>
    %49 = arith.mulf %40, %19 : vector<8x128xf32>
    %50 = arith.addf %48, %49 : vector<8x128xf32>
    %c0_25 = arith.constant 0 : index
    %c0_26 = arith.constant 0 : index
    %51 = vector.load %arg13[%c0_25, %c0_26] : memref<64x128xf32, #tpu.memory_space<vmem>>, vector<8x128xf32>
    tpu.vector_store %arg13[%c0_25, %c0_26], %50 {strides = array<i32>} : memref<64x128xf32, #tpu.memory_space<vmem>>, vector<8x128xf32>,
    %c8 = arith.constant 8 : index
    %c0_27 = arith.constant 0 : index
    %52 = vector.load %arg12[%c8, %c0_27] : memref<64x384xf32, #tpu.memory_space<vmem>>, vector<8x384xf32>
    %53 = arith.truncf %50 : vector<8x128xf32> to vector<8x128xbf16>
    %c0_28 = arith.constant 0 : index
    %c0_29 = arith.constant 0 : index
    %54 = vector.load %arg6[%c0_28, %c0_29] : memref<128x384xbf16, #tpu.memory_space<vmem>>, vector<128x384xbf16>
    %cst_30 = arith.constant dense<0.000000e+00> : vector<8x384xf32>
    %55 = tpu.matmul %53, %54, %cst_30 {dimension_numbers = #tpu.dot_dimension_numbers<[1], [0], [0], [1], [0, 0, 1, 1], [], []>} : vector<8x128xbf16>, vector<128x384xbf16>, vector<8x384xf32> -> vector<8x384xf32>
    %56 = arith.addf %55, %18 : vector<8x384xf32>
    %57 = vector.extract_strided_slice %52 {offsets = [0, 0], sizes = [8, 128], strides = [1, 1]} : vector<8x384xf32> to vector<8x128xf32>
    %58 = vector.extract_strided_slice %56 {offsets = [0, 0], sizes = [8, 128], strides = [1, 1]} : vector<8x384xf32> to vector<8x128xf32>
    %59 = arith.addf %57, %58 : vector<8x128xf32>
    %60 = arith.negf %59 : vector<8x128xf32>
    %61 = math.exp %60 : vector<8x128xf32>
    %cst_31 = arith.constant 1.000000e+00 : f32
    %62 = vector.broadcast %cst_31 : f32 to vector<8x128xf32>
    %63 = arith.addf %62, %61 : vector<8x128xf32>
    %64 = arith.divf %62, %63 : vector<8x128xf32>
    %65 = vector.extract_strided_slice %52 {offsets = [0, 128], sizes = [8, 128], strides = [1, 1]} : vector<8x384xf32> to vector<8x128xf32>
    %66 = vector.extract_strided_slice %56 {offsets = [0, 128], sizes = [8, 128], strides = [1, 1]} : vector<8x384xf32> to vector<8x128xf32>
    %67 = arith.addf %65, %66 : vector<8x128xf32>
    %68 = arith.negf %67 : vector<8x128xf32>
    %69 = math.exp %68 : vector<8x128xf32>
    %cst_32 = arith.constant 1.000000e+00 : f32
    %70 = vector.broadcast %cst_32 : f32 to vector<8x128xf32>
    %71 = arith.addf %70, %69 : vector<8x128xf32>
    %72 = arith.divf %70, %71 : vector<8x128xf32>
    %73 = vector.extract_strided_slice %52 {offsets = [0, 256], sizes = [8, 128], strides = [1, 1]} : vector<8x384xf32> to vector<8x128xf32>
    %74 = vector.extract_strided_slice %56 {offsets = [0, 256], sizes = [8, 128], strides = [1, 1]} : vector<8x384xf32> to vector<8x128xf32>
    %75 = arith.mulf %64, %74 : vector<8x128xf32>
    %76 = arith.addf %73, %75 : vector<8x128xf32>
    %77 = math.tanh %76 : vector<8x128xf32>
    %cst_33 = arith.constant 1.000000e+00 : f32
    %78 = vector.broadcast %cst_33 : f32 to vector<8x128xf32>
    %79 = arith.subf %78, %72 : vector<8x128xf32>
    %80 = arith.mulf %79, %77 : vector<8x128xf32>
    %81 = arith.mulf %72, %50 : vector<8x128xf32>
    %82 = arith.addf %80, %81 : vector<8x128xf32>
    %c8_34 = arith.constant 8 : index
    %c0_35 = arith.constant 0 : index
    %83 = vector.load %arg13[%c8_34, %c0_35] : memref<64x128xf32, #tpu.memory_space<vmem>>, vector<8x128xf32>
    tpu.vector_store %arg13[%c8_34, %c0_35], %82 {strides = array<i32>} : memref<64x128xf32, #tpu.memory_space<vmem>>, vector<8x128xf32>,
    %c16 = arith.constant 16 : index
    %c0_36 = arith.constant 0 : index
    %84 = vector.load %arg12[%c16, %c0_36] : memref<64x384xf32, #tpu.memory_space<vmem>>, vector<8x384xf32>
    %85 = arith.truncf %82 : vector<8x128xf32> to vector<8x128xbf16>
    %c0_37 = arith.constant 0 : index
    %c0_38 = arith.constant 0 : index
    %86 = vector.load %arg6[%c0_37, %c0_38] : memref<128x384xbf16, #tpu.memory_space<vmem>>, vector<128x384xbf16>
    %cst_39 = arith.constant dense<0.000000e+00> : vector<8x384xf32>
    %87 = tpu.matmul %85, %86, %cst_39 {dimension_numbers = #tpu.dot_dimension_numbers<[1], [0], [0], [1], [0, 0, 1, 1], [], []>} : vector<8x128xbf16>, vector<128x384xbf16>, vector<8x384xf32> -> vector<8x384xf32>
    %88 = arith.addf %87, %18 : vector<8x384xf32>
    %89 = vector.extract_strided_slice %84 {offsets = [0, 0], sizes = [8, 128], strides = [1, 1]} : vector<8x384xf32> to vector<8x128xf32>
    %90 = vector.extract_strided_slice %88 {offsets = [0, 0], sizes = [8, 128], strides = [1, 1]} : vector<8x384xf32> to vector<8x128xf32>
    %91 = arith.addf %89, %90 : vector<8x128xf32>
    %92 = arith.negf %91 : vector<8x128xf32>
    %93 = math.exp %92 : vector<8x128xf32>
    %cst_40 = arith.constant 1.000000e+00 : f32
    %94 = vector.broadcast %cst_40 : f32 to vector<8x128xf32>
    %95 = arith.addf %94, %93 : vector<8x128xf32>
    %96 = arith.divf %94, %95 : vector<8x128xf32>
    %97 = vector.extract_strided_slice %84 {offsets = [0, 128], sizes = [8, 128], strides = [1, 1]} : vector<8x384xf32> to vector<8x128xf32>
    %98 = vector.extract_strided_slice %88 {offsets = [0, 128], sizes = [8, 128], strides = [1, 1]} : vector<8x384xf32> to vector<8x128xf32>
    %99 = arith.addf %97, %98 : vector<8x128xf32>
    %100 = arith.negf %99 : vector<8x128xf32>
    %101 = math.exp %100 : vector<8x128xf32>
    %cst_41 = arith.constant 1.000000e+00 : f32
    %102 = vector.broadcast %cst_41 : f32 to vector<8x128xf32>
    %103 = arith.addf %102, %101 : vector<8x128xf32>
    %104 = arith.divf %102, %103 : vector<8x128xf32>
    %105 = vector.extract_strided_slice %84 {offsets = [0, 256], sizes = [8, 128], strides = [1, 1]} : vector<8x384xf32> to vector<8x128xf32>
    %106 = vector.extract_strided_slice %88 {offsets = [0, 256], sizes = [8, 128], strides = [1, 1]} : vector<8x384xf32> to vector<8x128xf32>
    %107 = arith.mulf %96, %106 : vector<8x128xf32>
    %108 = arith.addf %105, %107 : vector<8x128xf32>
    %109 = math.tanh %108 : vector<8x128xf32>
    %cst_42 = arith.constant 1.000000e+00 : f32
    %110 = vector.broadcast %cst_42 : f32 to vector<8x128xf32>
    %111 = arith.subf %110, %104 : vector<8x128xf32>
    %112 = arith.mulf %111, %109 : vector<8x128xf32>
    %113 = arith.mulf %104, %82 : vector<8x128xf32>
    %114 = arith.addf %112, %113 : vector<8x128xf32>
    %c16_43 = arith.constant 16 : index
    %c0_44 = arith.constant 0 : index
    %115 = vector.load %arg13[%c16_43, %c0_44] : memref<64x128xf32, #tpu.memory_space<vmem>>, vector<8x128xf32>
    tpu.vector_store %arg13[%c16_43, %c0_44], %114 {strides = array<i32>} : memref<64x128xf32, #tpu.memory_space<vmem>>, vector<8x128xf32>,
    %c24 = arith.constant 24 : index
    %c0_45 = arith.constant 0 : index
    %116 = vector.load %arg12[%c24, %c0_45] : memref<64x384xf32, #tpu.memory_space<vmem>>, vector<8x384xf32>
    %117 = arith.truncf %114 : vector<8x128xf32> to vector<8x128xbf16>
    %c0_46 = arith.constant 0 : index
    %c0_47 = arith.constant 0 : index
    %118 = vector.load %arg6[%c0_46, %c0_47] : memref<128x384xbf16, #tpu.memory_space<vmem>>, vector<128x384xbf16>
    %cst_48 = arith.constant dense<0.000000e+00> : vector<8x384xf32>
    %119 = tpu.matmul %117, %118, %cst_48 {dimension_numbers = #tpu.dot_dimension_numbers<[1], [0], [0], [1], [0, 0, 1, 1], [], []>} : vector<8x128xbf16>, vector<128x384xbf16>, vector<8x384xf32> -> vector<8x384xf32>
    %120 = arith.addf %119, %18 : vector<8x384xf32>
    %121 = vector.extract_strided_slice %116 {offsets = [0, 0], sizes = [8, 128], strides = [1, 1]} : vector<8x384xf32> to vector<8x128xf32>
    %122 = vector.extract_strided_slice %120 {offsets = [0, 0], sizes = [8, 128], strides = [1, 1]} : vector<8x384xf32> to vector<8x128xf32>
    %123 = arith.addf %121, %122 : vector<8x128xf32>
    %124 = arith.negf %123 : vector<8x128xf32>
    %125 = math.exp %124 : vector<8x128xf32>
    %cst_49 = arith.constant 1.000000e+00 : f32
    %126 = vector.broadcast %cst_49 : f32 to vector<8x128xf32>
    %127 = arith.addf %126, %125 : vector<8x128xf32>
    %128 = arith.divf %126, %127 : vector<8x128xf32>
    %129 = vector.extract_strided_slice %116 {offsets = [0, 128], sizes = [8, 128], strides = [1, 1]} : vector<8x384xf32> to vector<8x128xf32>
    %130 = vector.extract_strided_slice %120 {offsets = [0, 128], sizes = [8, 128], strides = [1, 1]} : vector<8x384xf32> to vector<8x128xf32>
    %131 = arith.addf %129, %130 : vector<8x128xf32>
    %132 = arith.negf %131 : vector<8x128xf32>
    %133 = math.exp %132 : vector<8x128xf32>
    %cst_50 = arith.constant 1.000000e+00 : f32
    %134 = vector.broadcast %cst_50 : f32 to vector<8x128xf32>
    %135 = arith.addf %134, %133 : vector<8x128xf32>
    %136 = arith.divf %134, %135 : vector<8x128xf32>
    %137 = vector.extract_strided_slice %116 {offsets = [0, 256], sizes = [8, 128], strides = [1, 1]} : vector<8x384xf32> to vector<8x128xf32>
    %138 = vector.extract_strided_slice %120 {offsets = [0, 256], sizes = [8, 128], strides = [1, 1]} : vector<8x384xf32> to vector<8x128xf32>
    %139 = arith.mulf %128, %138 : vector<8x128xf32>
    %140 = arith.addf %137, %139 : vector<8x128xf32>
    %141 = math.tanh %140 : vector<8x128xf32>
    %cst_51 = arith.constant 1.000000e+00 : f32
    %142 = vector.broadcast %cst_51 : f32 to vector<8x128xf32>
    %143 = arith.subf %142, %136 : vector<8x128xf32>
    %144 = arith.mulf %143, %141 : vector<8x128xf32>
    %145 = arith.mulf %136, %114 : vector<8x128xf32>
    %146 = arith.addf %144, %145 : vector<8x128xf32>
    %c24_52 = arith.constant 24 : index
    %c0_53 = arith.constant 0 : index
    %147 = vector.load %arg13[%c24_52, %c0_53] : memref<64x128xf32, #tpu.memory_space<vmem>>, vector<8x128xf32>
    tpu.vector_store %arg13[%c24_52, %c0_53], %146 {strides = array<i32>} : memref<64x128xf32, #tpu.memory_space<vmem>>, vector<8x128xf32>,
    %c32 = arith.constant 32 : index
    %c0_54 = arith.constant 0 : index
    %148 = vector.load %arg12[%c32, %c0_54] : memref<64x384xf32, #tpu.memory_space<vmem>>, vector<8x384xf32>
    %149 = arith.truncf %146 : vector<8x128xf32> to vector<8x128xbf16>
    %c0_55 = arith.constant 0 : index
    %c0_56 = arith.constant 0 : index
    %150 = vector.load %arg6[%c0_55, %c0_56] : memref<128x384xbf16, #tpu.memory_space<vmem>>, vector<128x384xbf16>
    %cst_57 = arith.constant dense<0.000000e+00> : vector<8x384xf32>
    %151 = tpu.matmul %149, %150, %cst_57 {dimension_numbers = #tpu.dot_dimension_numbers<[1], [0], [0], [1], [0, 0, 1, 1], [], []>} : vector<8x128xbf16>, vector<128x384xbf16>, vector<8x384xf32> -> vector<8x384xf32>
    %152 = arith.addf %151, %18 : vector<8x384xf32>
    %153 = vector.extract_strided_slice %148 {offsets = [0, 0], sizes = [8, 128], strides = [1, 1]} : vector<8x384xf32> to vector<8x128xf32>
    %154 = vector.extract_strided_slice %152 {offsets = [0, 0], sizes = [8, 128], strides = [1, 1]} : vector<8x384xf32> to vector<8x128xf32>
    %155 = arith.addf %153, %154 : vector<8x128xf32>
    %156 = arith.negf %155 : vector<8x128xf32>
    %157 = math.exp %156 : vector<8x128xf32>
    %cst_58 = arith.constant 1.000000e+00 : f32
    %158 = vector.broadcast %cst_58 : f32 to vector<8x128xf32>
    %159 = arith.addf %158, %157 : vector<8x128xf32>
    %160 = arith.divf %158, %159 : vector<8x128xf32>
    %161 = vector.extract_strided_slice %148 {offsets = [0, 128], sizes = [8, 128], strides = [1, 1]} : vector<8x384xf32> to vector<8x128xf32>
    %162 = vector.extract_strided_slice %152 {offsets = [0, 128], sizes = [8, 128], strides = [1, 1]} : vector<8x384xf32> to vector<8x128xf32>
    %163 = arith.addf %161, %162 : vector<8x128xf32>
    %164 = arith.negf %163 : vector<8x128xf32>
    %165 = math.exp %164 : vector<8x128xf32>
    %cst_59 = arith.constant 1.000000e+00 : f32
    %166 = vector.broadcast %cst_59 : f32 to vector<8x128xf32>
    %167 = arith.addf %166, %165 : vector<8x128xf32>
    %168 = arith.divf %166, %167 : vector<8x128xf32>
    %169 = vector.extract_strided_slice %148 {offsets = [0, 256], sizes = [8, 128], strides = [1, 1]} : vector<8x384xf32> to vector<8x128xf32>
    %170 = vector.extract_strided_slice %152 {offsets = [0, 256], sizes = [8, 128], strides = [1, 1]} : vector<8x384xf32> to vector<8x128xf32>
    %171 = arith.mulf %160, %170 : vector<8x128xf32>
    %172 = arith.addf %169, %171 : vector<8x128xf32>
    %173 = math.tanh %172 : vector<8x128xf32>
    %cst_60 = arith.constant 1.000000e+00 : f32
    %174 = vector.broadcast %cst_60 : f32 to vector<8x128xf32>
    %175 = arith.subf %174, %168 : vector<8x128xf32>
    %176 = arith.mulf %175, %173 : vector<8x128xf32>
    %177 = arith.mulf %168, %146 : vector<8x128xf32>
    %178 = arith.addf %176, %177 : vector<8x128xf32>
    %c32_61 = arith.constant 32 : index
    %c0_62 = arith.constant 0 : index
    %179 = vector.load %arg13[%c32_61, %c0_62] : memref<64x128xf32, #tpu.memory_space<vmem>>, vector<8x128xf32>
    tpu.vector_store %arg13[%c32_61, %c0_62], %178 {strides = array<i32>} : memref<64x128xf32, #tpu.memory_space<vmem>>, vector<8x128xf32>,
    %c40 = arith.constant 40 : index
    %c0_63 = arith.constant 0 : index
    %180 = vector.load %arg12[%c40, %c0_63] : memref<64x384xf32, #tpu.memory_space<vmem>>, vector<8x384xf32>
    %181 = arith.truncf %178 : vector<8x128xf32> to vector<8x128xbf16>
    %c0_64 = arith.constant 0 : index
    %c0_65 = arith.constant 0 : index
    %182 = vector.load %arg6[%c0_64, %c0_65] : memref<128x384xbf16, #tpu.memory_space<vmem>>, vector<128x384xbf16>
    %cst_66 = arith.constant dense<0.000000e+00> : vector<8x384xf32>
    %183 = tpu.matmul %181, %182, %cst_66 {dimension_numbers = #tpu.dot_dimension_numbers<[1], [0], [0], [1], [0, 0, 1, 1], [], []>} : vector<8x128xbf16>, vector<128x384xbf16>, vector<8x384xf32> -> vector<8x384xf32>
    %184 = arith.addf %183, %18 : vector<8x384xf32>
    %185 = vector.extract_strided_slice %180 {offsets = [0, 0], sizes = [8, 128], strides = [1, 1]} : vector<8x384xf32> to vector<8x128xf32>
    %186 = vector.extract_strided_slice %184 {offsets = [0, 0], sizes = [8, 128], strides = [1, 1]} : vector<8x384xf32> to vector<8x128xf32>
    %187 = arith.addf %185, %186 : vector<8x128xf32>
    %188 = arith.negf %187 : vector<8x128xf32>
    %189 = math.exp %188 : vector<8x128xf32>
    %cst_67 = arith.constant 1.000000e+00 : f32
    %190 = vector.broadcast %cst_67 : f32 to vector<8x128xf32>
    %191 = arith.addf %190, %189 : vector<8x128xf32>
    %192 = arith.divf %190, %191 : vector<8x128xf32>
    %193 = vector.extract_strided_slice %180 {offsets = [0, 128], sizes = [8, 128], strides = [1, 1]} : vector<8x384xf32> to vector<8x128xf32>
    %194 = vector.extract_strided_slice %184 {offsets = [0, 128], sizes = [8, 128], strides = [1, 1]} : vector<8x384xf32> to vector<8x128xf32>
    %195 = arith.addf %193, %194 : vector<8x128xf32>
    %196 = arith.negf %195 : vector<8x128xf32>
    %197 = math.exp %196 : vector<8x128xf32>
    %cst_68 = arith.constant 1.000000e+00 : f32
    %198 = vector.broadcast %cst_68 : f32 to vector<8x128xf32>
    %199 = arith.addf %198, %197 : vector<8x128xf32>
    %200 = arith.divf %198, %199 : vector<8x128xf32>
    %201 = vector.extract_strided_slice %180 {offsets = [0, 256], sizes = [8, 128], strides = [1, 1]} : vector<8x384xf32> to vector<8x128xf32>
    %202 = vector.extract_strided_slice %184 {offsets = [0, 256], sizes = [8, 128], strides = [1, 1]} : vector<8x384xf32> to vector<8x128xf32>
    %203 = arith.mulf %192, %202 : vector<8x128xf32>
    %204 = arith.addf %201, %203 : vector<8x128xf32>
    %205 = math.tanh %204 : vector<8x128xf32>
    %cst_69 = arith.constant 1.000000e+00 : f32
    %206 = vector.broadcast %cst_69 : f32 to vector<8x128xf32>
    %207 = arith.subf %206, %200 : vector<8x128xf32>
    %208 = arith.mulf %207, %205 : vector<8x128xf32>
    %209 = arith.mulf %200, %178 : vector<8x128xf32>
    %210 = arith.addf %208, %209 : vector<8x128xf32>
    %c40_70 = arith.constant 40 : index
    %c0_71 = arith.constant 0 : index
    %211 = vector.load %arg13[%c40_70, %c0_71] : memref<64x128xf32, #tpu.memory_space<vmem>>, vector<8x128xf32>
    tpu.vector_store %arg13[%c40_70, %c0_71], %210 {strides = array<i32>} : memref<64x128xf32, #tpu.memory_space<vmem>>, vector<8x128xf32>,
    %c48 = arith.constant 48 : index
    %c0_72 = arith.constant 0 : index
    %212 = vector.load %arg12[%c48, %c0_72] : memref<64x384xf32, #tpu.memory_space<vmem>>, vector<8x384xf32>
    %213 = arith.truncf %210 : vector<8x128xf32> to vector<8x128xbf16>
    %c0_73 = arith.constant 0 : index
    %c0_74 = arith.constant 0 : index
    %214 = vector.load %arg6[%c0_73, %c0_74] : memref<128x384xbf16, #tpu.memory_space<vmem>>, vector<128x384xbf16>
    %cst_75 = arith.constant dense<0.000000e+00> : vector<8x384xf32>
    %215 = tpu.matmul %213, %214, %cst_75 {dimension_numbers = #tpu.dot_dimension_numbers<[1], [0], [0], [1], [0, 0, 1, 1], [], []>} : vector<8x128xbf16>, vector<128x384xbf16>, vector<8x384xf32> -> vector<8x384xf32>
    %216 = arith.addf %215, %18 : vector<8x384xf32>
    %217 = vector.extract_strided_slice %212 {offsets = [0, 0], sizes = [8, 128], strides = [1, 1]} : vector<8x384xf32> to vector<8x128xf32>
    %218 = vector.extract_strided_slice %216 {offsets = [0, 0], sizes = [8, 128], strides = [1, 1]} : vector<8x384xf32> to vector<8x128xf32>
    %219 = arith.addf %217, %218 : vector<8x128xf32>
    %220 = arith.negf %219 : vector<8x128xf32>
    %221 = math.exp %220 : vector<8x128xf32>
    %cst_76 = arith.constant 1.000000e+00 : f32
    %222 = vector.broadcast %cst_76 : f32 to vector<8x128xf32>
    %223 = arith.addf %222, %221 : vector<8x128xf32>
    %224 = arith.divf %222, %223 : vector<8x128xf32>
    %225 = vector.extract_strided_slice %212 {offsets = [0, 128], sizes = [8, 128], strides = [1, 1]} : vector<8x384xf32> to vector<8x128xf32>
    %226 = vector.extract_strided_slice %216 {offsets = [0, 128], sizes = [8, 128], strides = [1, 1]} : vector<8x384xf32> to vector<8x128xf32>
    %227 = arith.addf %225, %226 : vector<8x128xf32>
    %228 = arith.negf %227 : vector<8x128xf32>
    %229 = math.exp %228 : vector<8x128xf32>
    %cst_77 = arith.constant 1.000000e+00 : f32
    %230 = vector.broadcast %cst_77 : f32 to vector<8x128xf32>
    %231 = arith.addf %230, %229 : vector<8x128xf32>
    %232 = arith.divf %230, %231 : vector<8x128xf32>
    %233 = vector.extract_strided_slice %212 {offsets = [0, 256], sizes = [8, 128], strides = [1, 1]} : vector<8x384xf32> to vector<8x128xf32>
    %234 = vector.extract_strided_slice %216 {offsets = [0, 256], sizes = [8, 128], strides = [1, 1]} : vector<8x384xf32> to vector<8x128xf32>
    %235 = arith.mulf %224, %234 : vector<8x128xf32>
    %236 = arith.addf %233, %235 : vector<8x128xf32>
    %237 = math.tanh %236 : vector<8x128xf32>
    %cst_78 = arith.constant 1.000000e+00 : f32
    %238 = vector.broadcast %cst_78 : f32 to vector<8x128xf32>
    %239 = arith.subf %238, %232 : vector<8x128xf32>
    %240 = arith.mulf %239, %237 : vector<8x128xf32>
    %241 = arith.mulf %232, %210 : vector<8x128xf32>
    %242 = arith.addf %240, %241 : vector<8x128xf32>
    %c48_79 = arith.constant 48 : index
    %c0_80 = arith.constant 0 : index
    %243 = vector.load %arg13[%c48_79, %c0_80] : memref<64x128xf32, #tpu.memory_space<vmem>>, vector<8x128xf32>
    tpu.vector_store %arg13[%c48_79, %c0_80], %242 {strides = array<i32>} : memref<64x128xf32, #tpu.memory_space<vmem>>, vector<8x128xf32>,
    %c56 = arith.constant 56 : index
    %c0_81 = arith.constant 0 : index
    %244 = vector.load %arg12[%c56, %c0_81] : memref<64x384xf32, #tpu.memory_space<vmem>>, vector<8x384xf32>
    %245 = arith.truncf %242 : vector<8x128xf32> to vector<8x128xbf16>
    %c0_82 = arith.constant 0 : index
    %c0_83 = arith.constant 0 : index
    %246 = vector.load %arg6[%c0_82, %c0_83] : memref<128x384xbf16, #tpu.memory_space<vmem>>, vector<128x384xbf16>
    %cst_84 = arith.constant dense<0.000000e+00> : vector<8x384xf32>
    %247 = tpu.matmul %245, %246, %cst_84 {dimension_numbers = #tpu.dot_dimension_numbers<[1], [0], [0], [1], [0, 0, 1, 1], [], []>} : vector<8x128xbf16>, vector<128x384xbf16>, vector<8x384xf32> -> vector<8x384xf32>
    %248 = arith.addf %247, %18 : vector<8x384xf32>
    %249 = vector.extract_strided_slice %244 {offsets = [0, 0], sizes = [8, 128], strides = [1, 1]} : vector<8x384xf32> to vector<8x128xf32>
    %250 = vector.extract_strided_slice %248 {offsets = [0, 0], sizes = [8, 128], strides = [1, 1]} : vector<8x384xf32> to vector<8x128xf32>
    %251 = arith.addf %249, %250 : vector<8x128xf32>
    %252 = arith.negf %251 : vector<8x128xf32>
    %253 = math.exp %252 : vector<8x128xf32>
    %cst_85 = arith.constant 1.000000e+00 : f32
    %254 = vector.broadcast %cst_85 : f32 to vector<8x128xf32>
    %255 = arith.addf %254, %253 : vector<8x128xf32>
    %256 = arith.divf %254, %255 : vector<8x128xf32>
    %257 = vector.extract_strided_slice %244 {offsets = [0, 128], sizes = [8, 128], strides = [1, 1]} : vector<8x384xf32> to vector<8x128xf32>
    %258 = vector.extract_strided_slice %248 {offsets = [0, 128], sizes = [8, 128], strides = [1, 1]} : vector<8x384xf32> to vector<8x128xf32>
    %259 = arith.addf %257, %258 : vector<8x128xf32>
    %260 = arith.negf %259 : vector<8x128xf32>
    %261 = math.exp %260 : vector<8x128xf32>
    %cst_86 = arith.constant 1.000000e+00 : f32
    %262 = vector.broadcast %cst_86 : f32 to vector<8x128xf32>
    %263 = arith.addf %262, %261 : vector<8x128xf32>
    %264 = arith.divf %262, %263 : vector<8x128xf32>
    %265 = vector.extract_strided_slice %244 {offsets = [0, 256], sizes = [8, 128], strides = [1, 1]} : vector<8x384xf32> to vector<8x128xf32>
    %266 = vector.extract_strided_slice %248 {offsets = [0, 256], sizes = [8, 128], strides = [1, 1]} : vector<8x384xf32> to vector<8x128xf32>
    %267 = arith.mulf %256, %266 : vector<8x128xf32>
    %268 = arith.addf %265, %267 : vector<8x128xf32>
    %269 = math.tanh %268 : vector<8x128xf32>
    %cst_87 = arith.constant 1.000000e+00 : f32
    %270 = vector.broadcast %cst_87 : f32 to vector<8x128xf32>
    %271 = arith.subf %270, %264 : vector<8x128xf32>
    %272 = arith.mulf %271, %269 : vector<8x128xf32>
    %273 = arith.mulf %264, %242 : vector<8x128xf32>
    %274 = arith.addf %272, %273 : vector<8x128xf32>
    %c56_88 = arith.constant 56 : index
    %c0_89 = arith.constant 0 : index
    %275 = vector.load %arg13[%c56_88, %c0_89] : memref<64x128xf32, #tpu.memory_space<vmem>>, vector<8x128xf32>
    tpu.vector_store %arg13[%c56_88, %c0_89], %274 {strides = array<i32>} : memref<64x128xf32, #tpu.memory_space<vmem>>, vector<8x128xf32>,
    %c0_90 = arith.constant 0 : index
    %c0_91 = arith.constant 0 : index
    %276 = vector.load %arg11[%c0_90, %c0_91] : memref<8x128xf32, #tpu.memory_space<vmem>>, vector<8x128xf32>
    tpu.vector_store %arg11[%c0_90, %c0_91], %274 {strides = array<i32>} : memref<8x128xf32, #tpu.memory_space<vmem>>, vector<8x128xf32>,
    %c0_92 = arith.constant 0 : index
    %c0_93 = arith.constant 0 : index
    %277 = vector.load %arg13[%c0_92, %c0_93] : memref<64x128xf32, #tpu.memory_space<vmem>>, vector<64x128xf32>
    %278 = arith.truncf %277 : vector<64x128xf32> to vector<64x128xbf16>
    %c0_94 = arith.constant 0 : index
    %c0_95 = arith.constant 0 : index
    %279 = vector.load %arg8[%c0_94, %c0_95] : memref<128x128xbf16, #tpu.memory_space<vmem>>, vector<128x128xbf16>
    %cst_96 = arith.constant dense<0.000000e+00> : vector<64x128xf32>
    %280 = tpu.matmul %278, %279, %cst_96 {dimension_numbers = #tpu.dot_dimension_numbers<[1], [0], [0], [1], [0, 0, 1, 1], [], []>} : vector<64x128xbf16>, vector<128x128xbf16>, vector<64x128xf32> -> vector<64x128xf32>
    %c0_97 = arith.constant 0 : index
    %c0_98 = arith.constant 0 : index
    %281 = vector.load %arg9[%c0_97, %c0_98] : memref<1x128xf32, #tpu.memory_space<vmem>>, vector<1x128xf32>
    %282 = vector.broadcast %281 : vector<1x128xf32> to vector<64x128xf32>
    %283 = arith.addf %280, %282 : vector<64x128xf32>
    %cst_99 = arith.constant dense<0xFF800000> : vector<64xf32>
    %284 = vector.multi_reduction <maximumf>, %283, %cst_99 [1] : vector<64x128xf32> to vector<64xf32>
    %285 = vector.shape_cast %284 : vector<64xf32> to vector<64x1xf32>
    %286 = vector.broadcast %285 : vector<64x1xf32> to vector<64x128xf32>
    %287 = arith.subf %283, %286 : vector<64x128xf32>
    %288 = math.exp %287 : vector<64x128xf32>
    %cst_100 = arith.constant dense<0.000000e+00> : vector<64xf32>
    %289 = vector.multi_reduction <add>, %288, %cst_100 [1] : vector<64x128xf32> to vector<64xf32>
    %290 = vector.shape_cast %289 : vector<64xf32> to vector<64x1xf32>
    %291 = vector.broadcast %290 : vector<64x1xf32> to vector<64x128xf32>
    %292 = arith.divf %288, %291 : vector<64x128xf32>
    %c0_101 = arith.constant 0 : index
    %c0_102 = arith.constant 0 : index
    %293 = vector.load %arg10[%c0_101, %c0_102] : memref<64x128xf32, #tpu.memory_space<vmem>>, vector<64x128xf32>
    tpu.vector_store %arg10[%c0_101, %c0_102], %292 {strides = array<i32>} : memref<64x128xf32, #tpu.memory_space<vmem>>, vector<64x128xf32>,
    return
  }
}

</mosaic_0001>

<llo_original>
// kernel: tpu_custom_call.1
$region0: #{tpu_custom_call.1}
  #allocation0 [shape = 'u32[]', space=smem, size = 0x4, offset = 0x4, fixed_abs, tag = 'smem constant byte address 0x4 - core index']
  #allocation1 [shape = 'u32[72,128]{1,0:T(1,128)}', space=vmem, size = 0x9000, scoped, tag = 'internal scratch']
  #allocation2 [shape = 'f32[64,384]{1,0:T(8,128)}', space=vmem, size = 0x18000, scoped, tag = 'scratch operand']
  #allocation3 [shape = 'f32[64,128]{1,0:T(8,128)}', space=vmem, size = 0x8000, scoped, tag = 'scratch operand']
  %s0 = inlined_call_operand.vmem [shape: f32[64,16], index: 0, kind: input, shape index: {}]
  %s1 = inlined_call_operand.vmem [shape: f32[8,128], index: 1, kind: input, shape index: {}]
  %s2 = inlined_call_operand.vmem [shape: bf16[16,128], index: 2, kind: input, shape index: {}]
  %s3 = inlined_call_operand.vmem [shape: f32[1,128], index: 3, kind: input, shape index: {}]
  %s4 = inlined_call_operand.hbm [shape: bf16[128,384], index: 4, kind: input, shape index: {}]
  %s5 = inlined_call_operand.vmem [shape: f32[1,384], index: 5, kind: input, shape index: {}]
  %s6 = inlined_call_operand.hbm [shape: bf16[128,384], index: 6, kind: input, shape index: {}]
  %s7 = inlined_call_operand.vmem [shape: f32[1,384], index: 7, kind: input, shape index: {}]
  %s8 = inlined_call_operand.vmem [shape: bf16[128,128], index: 8, kind: input, shape index: {}]
  %s9 = inlined_call_operand.vmem [shape: f32[1,128], index: 9, kind: input, shape index: {}]
  %s10 = inlined_call_operand.hbm [shape: f32[64,128], index: 10, kind: output, shape index: {0}]
  %s11 = inlined_call_operand.hbm [shape: f32[8,128], index: 11, kind: output, shape index: {1}]
  %12 = xla_tuple %s10, %s11
  %s13 = sld [smem:[#allocation0]]
  $region66: #{tpu_custom_call.1} parent=0
    _
  %s15 = ssub.s32 1, %s13
  %s16 = scalar_select 0, %s15, %s13
  $region1: #{tpu_custom_call.1} parent=0
    #allocation4 [shape = 'u8[98304]{0}', space=vmem, size = 0x18000, scoped, tag = 'input window, operand 4, single buffered']
    #allocation5 [shape = 's32[1]{0}', space=sflag, size = 0x4, scoped, tag = 'scoped memory for tpu_custom_call.1']
    #allocation6 [shape = 's32[1]{0}', space=sflag, size = 0x4, scoped, tag = 'scoped memory for tpu_custom_call.1']
    #allocation7 [shape = 'u8[98304]{0}', space=vmem, size = 0x18000, scoped, tag = 'input window, operand 6, single buffered']
    #allocation8 [shape = 's32[1]{0}', space=sflag, size = 0x4, scoped, tag = 'scoped memory for tpu_custom_call.1']
    #allocation9 [shape = 'u8[32768]{0}', space=vmem, size = 0x8000, scoped, tag = 'output window, operand 0, single buffered']
    #allocation10 [shape = 'u8[4096]{0}', space=vmem, size = 0x1000, scoped, tag = 'output window, operand 1, single buffered']
    #allocation11 [shape = 's32[1]{0}', space=sflag, size = 0x4, scoped, tag = 'scoped memory for tpu_custom_call.1']
    %17 = vsyncpa [#allocation5], 0
    %18 = vsyncpa [#allocation8], 0
    %19 = vsyncpa [#allocation6], 0
    %20 = vsyncpa [#allocation11], 0
    // Predicated region
    $region2: #{tpu_custom_call.1} parent=1 // pred_check
      _
    $region3: #{tpu_custom_call.1} parent=1 // pred_check_branch
      %22 = sbr.rel (0) target = $region5
    $region4: #{tpu_custom_call.1} parent=1 // pred_region
      _
    $region5: #{tpu_custom_call.1} parent=1 // pred_fallthru
      _
    // Predicated region
    $region6: #{tpu_custom_call.1} parent=1 // pred_check
      _
    $region7: #{tpu_custom_call.1} parent=1 // pred_check_branch
      %24 = sbr.rel (0) target = $region9
    $region8: #{tpu_custom_call.1} parent=1 // pred_region
      _
    $region9: #{tpu_custom_call.1} parent=1 // pred_fallthru
      _
    // Predicated region
    $region10: #{tpu_custom_call.1} parent=1 // pred_check
      _
    $region11: #{tpu_custom_call.1} parent=1 // pred_check_branch
      %26 = sbr.rel (0) target = $region13
    $region12: #{tpu_custom_call.1} parent=1 // pred_region
      _
    $region13: #{tpu_custom_call.1} parent=1 // pred_fallthru
      _
    // Predicated region
    $region14: #{tpu_custom_call.1} parent=1 // pred_check
      _
    $region15: #{tpu_custom_call.1} parent=1 // pred_check_branch
      %28 = sbr.rel (0) target = $region17
    $region16: #{tpu_custom_call.1} parent=1 // pred_region
      _
    $region17: #{tpu_custom_call.1} parent=1 // pred_fallthru
      _
    // Predicated region
    $region18: #{tpu_custom_call.1} parent=1 // pred_check
      _
    $region19: #{tpu_custom_call.1} parent=1 // pred_check_branch
      %30 = sbr.rel (0) target = $region21
    $region20: #{tpu_custom_call.1} parent=1 // pred_region
      %32 = vsyncadd [#allocation5], 0
      %s33 = sshll.u32 %s4, 4
      %s34 = int_to_ptr.hbm [resolvable:$true] %s33
      %s35 = sshll.u32 [#allocation4], 4
      %s36 = int_to_ptr.vmem [resolvable:$true] %s35
      %41 = dma.hbm_to_vmem [thread:$0]  %s34, 3072, %s36, [#allocation5], 192, 192, 12
    $region21: #{tpu_custom_call.1} parent=1 // pred_fallthru
      _
    // Predicated region
    $region22: #{tpu_custom_call.1} parent=1 // pred_check
      _
    $region23: #{tpu_custom_call.1} parent=1 // pred_check_branch
      %43 = sbr.rel (0) target = $region25
    $region24: #{tpu_custom_call.1} parent=1 // pred_region
      _
    $region25: #{tpu_custom_call.1} parent=1 // pred_fallthru
      _
    // Predicated region
    $region26: #{tpu_custom_call.1} parent=1 // pred_check
      _
    $region27: #{tpu_custom_call.1} parent=1 // pred_check_branch
      %45 = sbr.rel (0) target = $region29
    $region28: #{tpu_custom_call.1} parent=1 // pred_region
      %47 = vsyncadd [#allocation8], 0
      %s48 = sshll.u32 %s6, 4
      %s49 = int_to_ptr.hbm [resolvable:$true] %s48
      %s50 = sshll.u32 [#allocation7], 4
      %s51 = int_to_ptr.vmem [resolvable:$true] %s50
      %56 = dma.hbm_to_vmem [thread:$0]  %s49, 3072, %s51, [#allocation8], 192, 192, 12
    $region29: #{tpu_custom_call.1} parent=1 // pred_fallthru
      _
    // Predicated region
    $region30: #{tpu_custom_call.1} parent=1 // pred_check
      _
    $region31: #{tpu_custom_call.1} parent=1 // pred_check_branch
      %58 = sbr.rel (0) target = $region33
    $region32: #{tpu_custom_call.1} parent=1 // pred_region
      _
    $region33: #{tpu_custom_call.1} parent=1 // pred_fallthru
      _
    // Predicated region
    $region34: #{tpu_custom_call.1} parent=1 // pred_check
      _
    $region35: #{tpu_custom_call.1} parent=1 // pred_check_branch
      %60 = sbr.rel (0) target = $region37
    $region36: #{tpu_custom_call.1} parent=1 // pred_region
      _
    $region37: #{tpu_custom_call.1} parent=1 // pred_fallthru
      _
    // Predicated region
    $region38: #{tpu_custom_call.1} parent=1 // pred_check
      _
    $region39: #{tpu_custom_call.1} parent=1 // pred_check_branch
      %62 = sbr.rel (0) target = $region41
    $region40: #{tpu_custom_call.1} parent=1 // pred_region
      _
    $region41: #{tpu_custom_call.1} parent=1 // pred_fallthru
      _
    // Predicated region
    $region42: #{tpu_custom_call.1} parent=1 // pred_check
      _
    $region43: #{tpu_custom_call.1} parent=1 // pred_check_branch
      %64 = sbr.rel (0) target = $region45
    $region44: #{tpu_custom_call.1} parent=1 // pred_region
      %66 = dma.done [#allocation5], 3072
    $region45: #{tpu_custom_call.1} parent=1 // pred_fallthru
      _
    // Predicated region
    $region46: #{tpu_custom_call.1} parent=1 // pred_check
      _
    $region47: #{tpu_custom_call.1} parent=1 // pred_check_branch
      %68 = sbr.rel (0) target = $region49
    $region48: #{tpu_custom_call.1} parent=1 // pred_region
      %70 = dma.done [#allocation8], 3072
    $region49: #{tpu_custom_call.1} parent=1 // pred_fallthru
      _
    %v72 = vld [vmem:[%s0] sm:$0xff]
    %v73 = vld [vmem:[%s0 + $0x8] sm:$0xff]
    %v74 = vld [vmem:[%s0 + $0x10] sm:$0xff]
    %v75 = vld [vmem:[%s0 + $0x18] sm:$0xff]
    %v76 = vld [vmem:[%s0 + $0x20] sm:$0xff]
    %v77 = vld [vmem:[%s0 + $0x28] sm:$0xff]
    %v78 = vld [vmem:[%s0 + $0x30] sm:$0xff]
    %v79 = vld [vmem:[%s0 + $0x38] sm:$0xff]
    %v80 = vpack.c.bf16 %v73, %v72
    %v81 = vpack.c.bf16 %v75, %v74
    %v82 = vpack.c.bf16 %v77, %v76
    %v83 = vpack.c.bf16 %v79, %v78
    %v84 = vld [vmem:[%s2] sm:$0xf]
    %v85 = vld [vmem:[%s2 + $0x4] sm:$0xf]
    %v86 = vld [vmem:[%s3] sm:$0x1]
    %v88 = vperm.slane %v86, 0
    %v92 = vunpack.c.l.b16 %v84
    %v93 = vunpack.c.l.b16 %v85
    %v94 = vpack.c.b16 %v93, %v92
    %vm96 = vcmask 130048
    %v98 = vsel %vm96, %v80, 0
    %v101 = vsel %vm96, %v81, 0
    %v104 = vsel %vm96, %v82, 0
    %v107 = vsel %vm96, %v83, 0
    %109 = vmatpush.bf16.msra.mxu0 0
    %110 = vmatpush.bf16.msra.mxu0 0
    %111 = vmatpush.bf16.msra.mxu0 0
    %112 = vmatpush.bf16.msra.mxu0 0
    %113 = vmatpush.bf16.msra.mxu0 0
    %114 = vmatpush.bf16.msra.mxu0 0
    %115 = vmatpush.bf16.msra.mxu0 0
    %116 = vmatpush.bf16.msra.mxu0 %v94
    %117 = vmatmul.bf16.gmra.mxu0 %v98
    %v118 = vpop.f32.mrf.mxu0
    %v119 = vadd.f32 %v88, %v118
    %v120 = vpop.f32.mrf.mxu0
    %v121 = vadd.f32 %v88, %v120
    %122 = vmatmul.bf16.gmra.mxu0 %v101
    %v123 = vpop.f32.mrf.mxu0
    %v124 = vadd.f32 %v88, %v123
    %v125 = vpop.f32.mrf.mxu0
    %v126 = vadd.f32 %v88, %v125
    %127 = vmatmul.bf16.gmra.mxu0 %v104
    %v128 = vpop.f32.mrf.mxu0
    %v129 = vadd.f32 %v88, %v128
    %v130 = vpop.f32.mrf.mxu0
    %v131 = vadd.f32 %v88, %v130
    %132 = vmatmul.bf16.gmra.mxu0 %v107
    %v133 = vpop.f32.mrf.mxu0
    %v134 = vadd.f32 %v88, %v133
    %v135 = vpop.f32.mrf.mxu0
    %v136 = vadd.f32 %v88, %v135
    %137 = vdwg.mxu0
    %v138 = vmax.f32 %v119, 0.0
    %v139 = vmax.f32 %v121, 0.0
    %v140 = vmax.f32 %v124, 0.0
    %v141 = vmax.f32 %v126, 0.0
    %v142 = vmax.f32 %v129, 0.0
    %v143 = vmax.f32 %v131, 0.0
    %v144 = vmax.f32 %v134, 0.0
    %v145 = vmax.f32 %v136, 0.0
    %v146 = vpack.c.bf16 %v139, %v138
    %v147 = vpack.c.bf16 %v141, %v140
    %v148 = vpack.c.bf16 %v143, %v142
    %v149 = vpack.c.bf16 %v145, %v144
    %v150 = vld [vmem:[#allocation4] sm:$0xff]
    %v151 = vld [vmem:[#allocation4 + $0x8] sm:$0xf]
    %v152 = vld [vmem:[#allocation4 + $0xc] sm:$0xff]
    %v153 = vld [vmem:[#allocation4 + $0x14] sm:$0xf]
    %v154 = vld [vmem:[#allocation4 + $0x18] sm:$0xff]
    %v155 = vld [vmem:[#allocation4 + $0x20] sm:$0xf]
    %v156 = vld [vmem:[#allocation4 + $0x24] sm:$0xff]
    %v157 = vld [vmem:[#allocation4 + $0x2c] sm:$0xf]
    %v158 = vld [vmem:[#allocation4 + $0x30] sm:$0xff]
    %v159 = vld [vmem:[#allocation4 + $0x38] sm:$0xf]
    %v160 = vld [vmem:[#allocation4 + $0x3c] sm:$0xff]
    %v161 = vld [vmem:[#allocation4 + $0x44] sm:$0xf]
    %v162 = vld [vmem:[#allocation4 + $0x48] sm:$0xff]
    %v163 = vld [vmem:[#allocation4 + $0x50] sm:$0xf]
    %v164 = vld [vmem:[#allocation4 + $0x54] sm:$0xff]
    %v165 = vld [vmem:[#allocation4 + $0x5c] sm:$0xf]
    %v166 = vld [vmem:[#allocation4 + $0x60] sm:$0xff]
    %v167 = vld [vmem:[#allocation4 + $0x68] sm:$0xf]
    %v168 = vld [vmem:[#allocation4 + $0x6c] sm:$0xff]
    %v169 = vld [vmem:[#allocation4 + $0x74] sm:$0xf]
    %v170 = vld [vmem:[#allocation4 + $0x78] sm:$0xff]
    %v171 = vld [vmem:[#allocation4 + $0x80] sm:$0xf]
    %v172 = vld [vmem:[#allocation4 + $0x84] sm:$0xff]
    %v173 = vld [vmem:[#allocation4 + $0x8c] sm:$0xf]
    %v174 = vld [vmem:[#allocation4 + $0x90] sm:$0xff]
    %v175 = vld [vmem:[#allocation4 + $0x98] sm:$0xf]
    %v176 = vld [vmem:[#allocation4 + $0x9c] sm:$0xff]
    %v177 = vld [vmem:[#allocation4 + $0xa4] sm:$0xf]
    %v178 = vld [vmem:[#allocation4 + $0xa8] sm:$0xff]
    %v179 = vld [vmem:[#allocation4 + $0xb0] sm:$0xf]
    %v180 = vld [vmem:[#allocation4 + $0xb4] sm:$0xff]
    %v181 = vld [vmem:[#allocation4 + $0xbc] sm:$0xf]
    %v182 = vld [vmem:[%s5] sm:$0x7]
    %v184 = vperm.slane %v182, 0
    %v185 = vperm.slane %v182, 1
    %v186 = vperm.slane %v182, 2
    %v222 = vunpack.c.l.b16 %v150
    %v223 = vunpack.c.h.b16 %v150
    %v224 = vunpack.c.l.b16 %v151
    %v225 = vunpack.c.l.b16 %v152
    %v226 = vunpack.c.h.b16 %v152
    %v227 = vunpack.c.l.b16 %v153
    %v228 = vunpack.c.l.b16 %v154
    %v229 = vunpack.c.h.b16 %v154
    %v230 = vunpack.c.l.b16 %v155
    %v231 = vunpack.c.l.b16 %v156
    %v232 = vunpack.c.h.b16 %v156
    %v233 = vunpack.c.l.b16 %v157
    %v234 = vunpack.c.l.b16 %v158
    %v235 = vunpack.c.h.b16 %v158
    %v236 = vunpack.c.l.b16 %v159
    %v237 = vunpack.c.l.b16 %v160
    %v238 = vunpack.c.h.b16 %v160
    %v239 = vunpack.c.l.b16 %v161
    %v240 = vunpack.c.l.b16 %v162
    %v241 = vunpack.c.h.b16 %v162
    %v242 = vunpack.c.l.b16 %v163
    %v243 = vunpack.c.l.b16 %v164
    %v244 = vunpack.c.h.b16 %v164
    %v245 = vunpack.c.l.b16 %v165
    %v246 = vunpack.c.l.b16 %v166
    %v247 = vunpack.c.h.b16 %v166
    %v248 = vunpack.c.l.b16 %v167
    %v249 = vunpack.c.l.b16 %v168
    %v250 = vunpack.c.h.b16 %v168
    %v251 = vunpack.c.l.b16 %v169
    %v252 = vunpack.c.l.b16 %v170
    %v253 = vunpack.c.h.b16 %v170
    %v254 = vunpack.c.l.b16 %v171
    %v255 = vunpack.c.l.b16 %v172
    %v256 = vunpack.c.h.b16 %v172
    %v257 = vunpack.c.l.b16 %v173
    %v258 = vunpack.c.l.b16 %v174
    %v259 = vunpack.c.h.b16 %v174
    %v260 = vunpack.c.l.b16 %v175
    %v261 = vunpack.c.l.b16 %v176
    %v262 = vunpack.c.h.b16 %v176
    %v263 = vunpack.c.l.b16 %v177
    %v264 = vunpack.c.l.b16 %v178
    %v265 = vunpack.c.h.b16 %v178
    %v266 = vunpack.c.l.b16 %v179
    %v267 = vunpack.c.l.b16 %v180
    %v268 = vunpack.c.h.b16 %v180
    %v269 = vunpack.c.l.b16 %v181
    %v270 = vpack.c.b16 %v225, %v222
    %v271 = vpack.c.b16 %v226, %v223
    %v272 = vpack.c.b16 %v227, %v224
    %v273 = vpack.c.b16 %v231, %v228
    %v274 = vpack.c.b16 %v232, %v229
    %v275 = vpack.c.b16 %v233, %v230
    %v276 = vpack.c.b16 %v237, %v234
    %v277 = vpack.c.b16 %v238, %v235
    %v278 = vpack.c.b16 %v239, %v236
    %v279 = vpack.c.b16 %v243, %v240
    %v280 = vpack.c.b16 %v244, %v241
    %v281 = vpack.c.b16 %v245, %v242
    %v282 = vpack.c.b16 %v249, %v246
    %v283 = vpack.c.b16 %v250, %v247
    %v284 = vpack.c.b16 %v251, %v248
    %v285 = vpack.c.b16 %v255, %v252
    %v286 = vpack.c.b16 %v256, %v253
    %v287 = vpack.c.b16 %v257, %v254
    %v288 = vpack.c.b16 %v261, %v258
    %v289 = vpack.c.b16 %v262, %v259
    %v290 = vpack.c.b16 %v263, %v260
    %v291 = vpack.c.b16 %v267, %v264
    %v292 = vpack.c.b16 %v268, %v265
    %v293 = vpack.c.b16 %v269, %v266
    %318 = vmatpush.bf16.msra.mxu0 %v291
    %319 = vmatpush.bf16.msra.mxu0 %v288
    %320 = vmatpush.bf16.msra.mxu0 %v285
    %321 = vmatpush.bf16.msra.mxu0 %v282
    %322 = vmatpush.bf16.msra.mxu0 %v279
    %323 = vmatpush.bf16.msra.mxu0 %v276
    %324 = vmatpush.bf16.msra.mxu0 %v273
    %325 = vmatpush.bf16.msra.mxu0 %v270
    %326 = vmatmul.bf16.gmra.mxu0 %v146
    %v327 = vpop.f32.mrf.mxu0
    %v328 = vadd.f32 %v184, %v327
    %v329 = vpop.f32.mrf.mxu0
    %v330 = vadd.f32 %v184, %v329
    %331 = vmatmul.bf16.gmra.mxu0 %v147
    %v332 = vpop.f32.mrf.mxu0
    %v333 = vadd.f32 %v184, %v332
    %v334 = vpop.f32.mrf.mxu0
    %v335 = vadd.f32 %v184, %v334
    %336 = vmatmul.bf16.gmra.mxu0 %v148
    %v337 = vpop.f32.mrf.mxu0
    %v338 = vadd.f32 %v184, %v337
    %v339 = vpop.f32.mrf.mxu0
    %v340 = vadd.f32 %v184, %v339
    %341 = vmatmul.bf16.gmra.mxu0 %v149
    %v342 = vpop.f32.mrf.mxu0
    %v343 = vadd.f32 %v184, %v342
    %v344 = vpop.f32.mrf.mxu0
    %v345 = vadd.f32 %v184, %v344
    %346 = vdwg.mxu0
    %347 = vmatpush.bf16.msra.mxu0 %v292
    %348 = vmatpush.bf16.msra.mxu0 %v289
    %349 = vmatpush.bf16.msra.mxu0 %v286
    %350 = vmatpush.bf16.msra.mxu0 %v283
    %351 = vmatpush.bf16.msra.mxu0 %v280
    %352 = vmatpush.bf16.msra.mxu0 %v277
    %353 = vmatpush.bf16.msra.mxu0 %v274
    %354 = vmatpush.bf16.msra.mxu0 %v271
    %355 = vmatmul.bf16.gmra.mxu0 %v146
    %v356 = vpop.f32.mrf.mxu0
    %v357 = vadd.f32 %v185, %v356
    %v358 = vpop.f32.mrf.mxu0
    %v359 = vadd.f32 %v185, %v358
    %360 = vmatmul.bf16.gmra.mxu0 %v147
    %v361 = vpop.f32.mrf.mxu0
    %v362 = vadd.f32 %v185, %v361
    %v363 = vpop.f32.mrf.mxu0
    %v364 = vadd.f32 %v185, %v363
    %365 = vmatmul.bf16.gmra.mxu0 %v148
    %v366 = vpop.f32.mrf.mxu0
    %v367 = vadd.f32 %v185, %v366
    %v368 = vpop.f32.mrf.mxu0
    %v369 = vadd.f32 %v185, %v368
    %370 = vmatmul.bf16.gmra.mxu0 %v149
    %v371 = vpop.f32.mrf.mxu0
    %v372 = vadd.f32 %v185, %v371
    %v373 = vpop.f32.mrf.mxu0
    %v374 = vadd.f32 %v185, %v373
    %375 = vdwg.mxu0
    %376 = vmatpush.bf16.msra.mxu0 %v293
    %377 = vmatpush.bf16.msra.mxu0 %v290
    %378 = vmatpush.bf16.msra.mxu0 %v287
    %379 = vmatpush.bf16.msra.mxu0 %v284
    %380 = vmatpush.bf16.msra.mxu0 %v281
    %381 = vmatpush.bf16.msra.mxu0 %v278
    %382 = vmatpush.bf16.msra.mxu0 %v275
    %383 = vmatpush.bf16.msra.mxu0 %v272
    %384 = vmatmul.bf16.gmra.mxu0 %v146
    %v385 = vpop.f32.mrf.mxu0
    %v386 = vadd.f32 %v186, %v385
    %v387 = vpop.f32.mrf.mxu0
    %v388 = vadd.f32 %v186, %v387
    %389 = vmatmul.bf16.gmra.mxu0 %v147
    %v390 = vpop.f32.mrf.mxu0
    %v391 = vadd.f32 %v186, %v390
    %v392 = vpop.f32.mrf.mxu0
    %v393 = vadd.f32 %v186, %v392
    %394 = vmatmul.bf16.gmra.mxu0 %v148
    %v395 = vpop.f32.mrf.mxu0
    %v396 = vadd.f32 %v186, %v395
    %v397 = vpop.f32.mrf.mxu0
    %v398 = vadd.f32 %v186, %v397
    %399 = vmatmul.bf16.gmra.mxu0 %v149
    %v400 = vpop.f32.mrf.mxu0
    %v401 = vadd.f32 %v186, %v400
    %v402 = vpop.f32.mrf.mxu0
    %v403 = vadd.f32 %v186, %v402
    %404 = vdwg.mxu0
    %405 = vst [vmem:[#allocation2] sm:$0xff] %v328
    %406 = vst [vmem:[#allocation2 + $0x8] sm:$0xff] %v357
    %407 = vst [vmem:[#allocation2 + $0x10] sm:$0xff] %v386
    %408 = vst [vmem:[#allocation2 + $0x18] sm:$0xff] %v330
    %409 = vst [vmem:[#allocation2 + $0x20] sm:$0xff] %v359
    %410 = vst [vmem:[#allocation2 + $0x28] sm:$0xff] %v388
    %411 = vst [vmem:[#allocation2 + $0x30] sm:$0xff] %v333
    %412 = vst [vmem:[#allocation2 + $0x38] sm:$0xff] %v362
    %413 = vst [vmem:[#allocation2 + $0x40] sm:$0xff] %v391
    %414 = vst [vmem:[#allocation2 + $0x48] sm:$0xff] %v335
    %415 = vst [vmem:[#allocation2 + $0x50] sm:$0xff] %v364
    %416 = vst [vmem:[#allocation2 + $0x58] sm:$0xff] %v393
    %417 = vst [vmem:[#allocation2 + $0x60] sm:$0xff] %v338
    %418 = vst [vmem:[#allocation2 + $0x68] sm:$0xff] %v367
    %419 = vst [vmem:[#allocation2 + $0x70] sm:$0xff] %v396
    %420 = vst [vmem:[#allocation2 + $0x78] sm:$0xff] %v340
    %421 = vst [vmem:[#allocation2 + $0x80] sm:$0xff] %v369
    %422 = vst [vmem:[#allocation2 + $0x88] sm:$0xff] %v398
    %423 = vst [vmem:[#allocation2 + $0x90] sm:$0xff] %v343
    %424 = vst [vmem:[#allocation2 + $0x98] sm:$0xff] %v372
    %425 = vst [vmem:[#allocation2 + $0xa0] sm:$0xff] %v401
    %426 = vst [vmem:[#allocation2 + $0xa8] sm:$0xff] %v345
    %427 = vst [vmem:[#allocation2 + $0xb0] sm:$0xff] %v374
    %428 = vst [vmem:[#allocation2 + $0xb8] sm:$0xff] %v403
    %v429 = vld [vmem:[%s7] sm:$0x7]
    %v431 = vperm.slane %v429, 0
    %v432 = vperm.slane %v429, 1
    %v433 = vperm.slane %v429, 2
    %v437 = vld [vmem:[%s1] sm:$0xff]
    %v438 = vld [vmem:[#allocation2] sm:$0xff]
    %v439 = vld [vmem:[#allocation2 + $0x8] sm:$0xff]
    %v440 = vld [vmem:[#allocation2 + $0x10] sm:$0xff]
    %v441 = vpack.c.bf16 %v437, %v437
    %v442 = vld [vmem:[#allocation7] sm:$0xff]
    %v443 = vld [vmem:[#allocation7 + $0x8] sm:$0xf]
    %v444 = vld [vmem:[#allocation7 + $0xc] sm:$0xff]
    %v445 = vld [vmem:[#allocation7 + $0x14] sm:$0xf]
    %v446 = vld [vmem:[#allocation7 + $0x18] sm:$0xff]
    %v447 = vld [vmem:[#allocation7 + $0x20] sm:$0xf]
    %v448 = vld [vmem:[#allocation7 + $0x24] sm:$0xff]
    %v449 = vld [vmem:[#allocation7 + $0x2c] sm:$0xf]
    %v450 = vld [vmem:[#allocation7 + $0x30] sm:$0xff]
    %v451 = vld [vmem:[#allocation7 + $0x38] sm:$0xf]
    %v452 = vld [vmem:[#allocation7 + $0x3c] sm:$0xff]
    %v453 = vld [vmem:[#allocation7 + $0x44] sm:$0xf]
    %v454 = vld [vmem:[#allocation7 + $0x48] sm:$0xff]
    %v455 = vld [vmem:[#allocation7 + $0x50] sm:$0xf]
    %v456 = vld [vmem:[#allocation7 + $0x54] sm:$0xff]
    %v457 = vld [vmem:[#allocation7 + $0x5c] sm:$0xf]
    %v458 = vld [vmem:[#allocation7 + $0x60] sm:$0xff]
    %v459 = vld [vmem:[#allocation7 + $0x68] sm:$0xf]
    %v460 = vld [vmem:[#allocation7 + $0x6c] sm:$0xff]
    %v461 = vld [vmem:[#allocation7 + $0x74] sm:$0xf]
    %v462 = vld [vmem:[#allocation7 + $0x78] sm:$0xff]
    %v463 = vld [vmem:[#allocation7 + $0x80] sm:$0xf]
    %v464 = vld [vmem:[#allocation7 + $0x84] sm:$0xff]
    %v465 = vld [vmem:[#allocation7 + $0x8c] sm:$0xf]
    %v466 = vld [vmem:[#allocation7 + $0x90] sm:$0xff]
    %v467 = vld [vmem:[#allocation7 + $0x98] sm:$0xf]
    %v468 = vld [vmem:[#allocation7 + $0x9c] sm:$0xff]
    %v469 = vld [vmem:[#allocation7 + $0xa4] sm:$0xf]
    %v470 = vld [vmem:[#allocation7 + $0xa8] sm:$0xff]
    %v471 = vld [vmem:[#allocation7 + $0xb0] sm:$0xf]
    %v472 = vld [vmem:[#allocation7 + $0xb4] sm:$0xff]
    %v473 = vld [vmem:[#allocation7 + $0xbc] sm:$0xf]
    %v506 = vunpack.c.l.b16 %v442
    %v507 = vunpack.c.h.b16 %v442
    %v508 = vunpack.c.l.b16 %v443
    %v509 = vunpack.c.l.b16 %v444
    %v510 = vunpack.c.h.b16 %v444
    %v511 = vunpack.c.l.b16 %v445
    %v512 = vunpack.c.l.b16 %v446
    %v513 = vunpack.c.h.b16 %v446
    %v514 = vunpack.c.l.b16 %v447
    %v515 = vunpack.c.l.b16 %v448
    %v516 = vunpack.c.h.b16 %v448
    %v517 = vunpack.c.l.b16 %v449
    %v518 = vunpack.c.l.b16 %v450
    %v519 = vunpack.c.h.b16 %v450
    %v520 = vunpack.c.l.b16 %v451
    %v521 = vunpack.c.l.b16 %v452
    %v522 = vunpack.c.h.b16 %v452
    %v523 = vunpack.c.l.b16 %v453
    %v524 = vunpack.c.l.b16 %v454
    %v525 = vunpack.c.h.b16 %v454
    %v526 = vunpack.c.l.b16 %v455
    %v527 = vunpack.c.l.b16 %v456
    %v528 = vunpack.c.h.b16 %v456
    %v529 = vunpack.c.l.b16 %v457
    %v530 = vunpack.c.l.b16 %v458
    %v531 = vunpack.c.h.b16 %v458
    %v532 = vunpack.c.l.b16 %v459
    %v533 = vunpack.c.l.b16 %v460
    %v534 = vunpack.c.h.b16 %v460
    %v535 = vunpack.c.l.b16 %v461
    %v536 = vunpack.c.l.b16 %v462
    %v537 = vunpack.c.h.b16 %v462
    %v538 = vunpack.c.l.b16 %v463
    %v539 = vunpack.c.l.b16 %v464
    %v540 = vunpack.c.h.b16 %v464
    %v541 = vunpack.c.l.b16 %v465
    %v542 = vunpack.c.l.b16 %v466
    %v543 = vunpack.c.h.b16 %v466
    %v544 = vunpack.c.l.b16 %v467
    %v545 = vunpack.c.l.b16 %v468
    %v546 = vunpack.c.h.b16 %v468
    %v547 = vunpack.c.l.b16 %v469
    %v548 = vunpack.c.l.b16 %v470
    %v549 = vunpack.c.h.b16 %v470
    %v550 = vunpack.c.l.b16 %v471
    %v551 = vunpack.c.l.b16 %v472
    %v552 = vunpack.c.h.b16 %v472
    %v553 = vunpack.c.l.b16 %v473
    %v554 = vpack.c.b16 %v509, %v506
    %v555 = vpack.c.b16 %v510, %v507
    %v556 = vpack.c.b16 %v511, %v508
    %v557 = vpack.c.b16 %v515, %v512
    %v558 = vpack.c.b16 %v516, %v513
    %v559 = vpack.c.b16 %v517, %v514
    %v560 = vpack.c.b16 %v521, %v518
    %v561 = vpack.c.b16 %v522, %v519
    %v562 = vpack.c.b16 %v523, %v520
    %v563 = vpack.c.b16 %v527, %v524
    %v564 = vpack.c.b16 %v528, %v525
    %v565 = vpack.c.b16 %v529, %v526
    %v566 = vpack.c.b16 %v533, %v530
    %v567 = vpack.c.b16 %v534, %v531
    %v568 = vpack.c.b16 %v535, %v532
    %v569 = vpack.c.b16 %v539, %v536
    %v570 = vpack.c.b16 %v540, %v537
    %v571 = vpack.c.b16 %v541, %v538
    %v572 = vpack.c.b16 %v545, %v542
    %v573 = vpack.c.b16 %v546, %v543
    %v574 = vpack.c.b16 %v547, %v544
    %v575 = vpack.c.b16 %v551, %v548
    %v576 = vpack.c.b16 %v552, %v549
    %v577 = vpack.c.b16 %v553, %v550
    %602 = vmatpush.bf16.msra.mxu0 %v575
    %603 = vmatpush.bf16.msra.mxu0 %v572
    %604 = vmatpush.bf16.msra.mxu0 %v569
    %605 = vmatpush.bf16.msra.mxu0 %v566
    %606 = vmatpush.bf16.msra.mxu0 %v563
    %607 = vmatpush.bf16.msra.mxu0 %v560
    %608 = vmatpush.bf16.msra.mxu0 %v557
    %609 = vmatpush.bf16.msra.mxu0 %v554
    %610 = vmatmul.bf16.gmra.mxu0 %v441
    %v611 = vpop.f32.mrf.mxu0
    %v612 = vadd.f32 %v431, %v611
    %v613 = vpop.f32.mrf.mxu0
    %614 = vdwg.mxu0
    %615 = vmatpush.bf16.msra.mxu0 %v576
    %616 = vmatpush.bf16.msra.mxu0 %v573
    %617 = vmatpush.bf16.msra.mxu0 %v570
    %618 = vmatpush.bf16.msra.mxu0 %v567
    %619 = vmatpush.bf16.msra.mxu0 %v564
    %620 = vmatpush.bf16.msra.mxu0 %v561
    %621 = vmatpush.bf16.msra.mxu0 %v558
    %622 = vmatpush.bf16.msra.mxu0 %v555
    %623 = vmatmul.bf16.gmra.mxu0 %v441
    %v624 = vpop.f32.mrf.mxu0
    %v625 = vadd.f32 %v432, %v624
    %v626 = vpop.f32.mrf.mxu0
    %627 = vdwg.mxu0
    %628 = vmatpush.bf16.msra.mxu0 %v577
    %629 = vmatpush.bf16.msra.mxu0 %v574
    %630 = vmatpush.bf16.msra.mxu0 %v571
    %631 = vmatpush.bf16.msra.mxu0 %v568
    %632 = vmatpush.bf16.msra.mxu0 %v565
    %633 = vmatpush.bf16.msra.mxu0 %v562
    %634 = vmatpush.bf16.msra.mxu0 %v559
    %635 = vmatpush.bf16.msra.mxu0 %v556
    %636 = vmatmul.bf16.gmra.mxu0 %v441
    %v637 = vpop.f32.mrf.mxu0
    %v638 = vadd.f32 %v433, %v637
    %v639 = vpop.f32.mrf.mxu0
    %640 = vdwg.mxu0
    %v641 = vadd.f32 %v438, %v612
    %v642 = vxor.u32 %v641, 2147483648
    %v643 = vmul.f32 %v642, 1.442695
    %v644 = vpow.pop %v643
    %v645 = vadd.f32 %v644, 1.0
    %v646 = vrcp.pop %v645
    %v647 = vmul.f32 %v645, %v646
    %v648 = vsub.f32 1.0, %v647
    %v649 = vmul.f32 %v646, %v648
    %v650 = vadd.f32 %v646, %v649
    %vm651 = vweird.f32 %v645
    %vm652 = vweird.f32 %v646
    %vm653 = vmor %vm651, %vm652
    %v654 = vsel %vm653, %v646, %v650
    %v655 = vand.u32 2147483647, %v645
    %vm656 = vcmp.eq.f32.partialorder %v655, 8.507059e+37
    %v657 = vand.u32 %v645, 2147483648
    %v658 = vor.u32 1.1754944e-38, %v657
    %v659 = vsel %vm656, %v658, %v654
    %v660 = vmul.f32 1.0, %v659
    %v661 = vadd.f32 %v439, %v625
    %v662 = vxor.u32 %v661, 2147483648
    %v663 = vmul.f32 %v662, 1.442695
    %v664 = vpow.pop %v663
    %v665 = vadd.f32 %v664, 1.0
    %v666 = vrcp.pop %v665
    %v667 = vmul.f32 %v665, %v666
    %v668 = vsub.f32 1.0, %v667
    %v669 = vmul.f32 %v666, %v668
    %v670 = vadd.f32 %v666, %v669
    %vm671 = vweird.f32 %v665
    %vm672 = vweird.f32 %v666
    %vm673 = vmor %vm671, %vm672
    %v674 = vsel %vm673, %v666, %v670
    %v675 = vand.u32 2147483647, %v665
    %vm676 = vcmp.eq.f32.partialorder %v675, 8.507059e+37
    %v677 = vand.u32 %v665, 2147483648
    %v678 = vor.u32 1.1754944e-38, %v677
    %v679 = vsel %vm676, %v678, %v674
    %v680 = vmul.f32 1.0, %v679
    %v681 = vmul.f32 %v660, %v638
    %v682 = vadd.f32 %v440, %v681
    %v683 = vtanh.pop %v682
    %v684 = vsub.f32 1.0, %v680
    %v685 = vmul.f32 %v684, %v683
    %v686 = vmul.f32 %v680, %v437
    %v687 = vadd.f32 %v685, %v686
    %688 = vst [vmem:[#allocation3] sm:$0xff] %v687
    %v689 = vld [vmem:[#allocation2 + $0x18] sm:$0xff]
    %v690 = vld [vmem:[#allocation2 + $0x20] sm:$0xff]
    %v691 = vld [vmem:[#allocation2 + $0x28] sm:$0xff]
    %v692 = vpack.c.bf16 %v687, %v687
    %v693 = vld [vmem:[#allocation7] sm:$0xff]
    %v694 = vld [vmem:[#allocation7 + $0x8] sm:$0xf]
    %v695 = vld [vmem:[#allocation7 + $0xc] sm:$0xff]
    %v696 = vld [vmem:[#allocation7 + $0x14] sm:$0xf]
    %v697 = vld [vmem:[#allocation7 + $0x18] sm:$0xff]
    %v698 = vld [vmem:[#allocation7 + $0x20] sm:$0xf]
    %v699 = vld [vmem:[#allocation7 + $0x24] sm:$0xff]
    %v700 = vld [vmem:[#allocation7 + $0x2c] sm:$0xf]
    %v701 = vld [vmem:[#allocation7 + $0x30] sm:$0xff]
    %v702 = vld [vmem:[#allocation7 + $0x38] sm:$0xf]
    %v703 = vld [vmem:[#allocation7 + $0x3c] sm:$0xff]
    %v704 = vld [vmem:[#allocation7 + $0x44] sm:$0xf]
    %v705 = vld [vmem:[#allocation7 + $0x48] sm:$0xff]
    %v706 = vld [vmem:[#allocation7 + $0x50] sm:$0xf]
    %v707 = vld [vmem:[#allocation7 + $0x54] sm:$0xff]
    %v708 = vld [vmem:[#allocation7 + $0x5c] sm:$0xf]
    %v709 = vld [vmem:[#allocation7 + $0x60] sm:$0xff]
    %v710 = vld [vmem:[#allocation7 + $0x68] sm:$0xf]
    %v711 = vld [vmem:[#allocation7 + $0x6c] sm:$0xff]
    %v712 = vld [vmem:[#allocation7 + $0x74] sm:$0xf]
    %v713 = vld [vmem:[#allocation7 + $0x78] sm:$0xff]
    %v714 = vld [vmem:[#allocation7 + $0x80] sm:$0xf]
    %v715 = vld [vmem:[#allocation7 + $0x84] sm:$0xff]
    %v716 = vld [vmem:[#allocation7 + $0x8c] sm:$0xf]
    %v717 = vld [vmem:[#allocation7 + $0x90] sm:$0xff]
    %v718 = vld [vmem:[#allocation7 + $0x98] sm:$0xf]
    %v719 = vld [vmem:[#allocation7 + $0x9c] sm:$0xff]
    %v720 = vld [vmem:[#allocation7 + $0xa4] sm:$0xf]
    %v721 = vld [vmem:[#allocation7 + $0xa8] sm:$0xff]
    %v722 = vld [vmem:[#allocation7 + $0xb0] sm:$0xf]
    %v723 = vld [vmem:[#allocation7 + $0xb4] sm:$0xff]
    %v724 = vld [vmem:[#allocation7 + $0xbc] sm:$0xf]
    %v757 = vunpack.c.l.b16 %v693
    %v758 = vunpack.c.h.b16 %v693
    %v759 = vunpack.c.l.b16 %v694
    %v760 = vunpack.c.l.b16 %v695
    %v761 = vunpack.c.h.b16 %v695
    %v762 = vunpack.c.l.b16 %v696
    %v763 = vunpack.c.l.b16 %v697
    %v764 = vunpack.c.h.b16 %v697
    %v765 = vunpack.c.l.b16 %v698
    %v766 = vunpack.c.l.b16 %v699
    %v767 = vunpack.c.h.b16 %v699
    %v768 = vunpack.c.l.b16 %v700
    %v769 = vunpack.c.l.b16 %v701
    %v770 = vunpack.c.h.b16 %v701
    %v771 = vunpack.c.l.b16 %v702
    %v772 = vunpack.c.l.b16 %v703
    %v773 = vunpack.c.h.b16 %v703
    %v774 = vunpack.c.l.b16 %v704
    %v775 = vunpack.c.l.b16 %v705
    %v776 = vunpack.c.h.b16 %v705
    %v777 = vunpack.c.l.b16 %v706
    %v778 = vunpack.c.l.b16 %v707
    %v779 = vunpack.c.h.b16 %v707
    %v780 = vunpack.c.l.b16 %v708
    %v781 = vunpack.c.l.b16 %v709
    %v782 = vunpack.c.h.b16 %v709
    %v783 = vunpack.c.l.b16 %v710
    %v784 = vunpack.c.l.b16 %v711
    %v785 = vunpack.c.h.b16 %v711
    %v786 = vunpack.c.l.b16 %v712
    %v787 = vunpack.c.l.b16 %v713
    %v788 = vunpack.c.h.b16 %v713
    %v789 = vunpack.c.l.b16 %v714
    %v790 = vunpack.c.l.b16 %v715
    %v791 = vunpack.c.h.b16 %v715
    %v792 = vunpack.c.l.b16 %v716
    %v793 = vunpack.c.l.b16 %v717
    %v794 = vunpack.c.h.b16 %v717
    %v795 = vunpack.c.l.b16 %v718
    %v796 = vunpack.c.l.b16 %v719
    %v797 = vunpack.c.h.b16 %v719
    %v798 = vunpack.c.l.b16 %v720
    %v799 = vunpack.c.l.b16 %v721
    %v800 = vunpack.c.h.b16 %v721
    %v801 = vunpack.c.l.b16 %v722
    %v802 = vunpack.c.l.b16 %v723
    %v803 = vunpack.c.h.b16 %v723
    %v804 = vunpack.c.l.b16 %v724
    %v805 = vpack.c.b16 %v760, %v757
    %v806 = vpack.c.b16 %v761, %v758
    %v807 = vpack.c.b16 %v762, %v759
    %v808 = vpack.c.b16 %v766, %v763
    %v809 = vpack.c.b16 %v767, %v764
    %v810 = vpack.c.b16 %v768, %v765
    %v811 = vpack.c.b16 %v772, %v769
    %v812 = vpack.c.b16 %v773, %v770
    %v813 = vpack.c.b16 %v774, %v771
    %v814 = vpack.c.b16 %v778, %v775
    %v815 = vpack.c.b16 %v779, %v776
    %v816 = vpack.c.b16 %v780, %v777
    %v817 = vpack.c.b16 %v784, %v781
    %v818 = vpack.c.b16 %v785, %v782
    %v819 = vpack.c.b16 %v786, %v783
    %v820 = vpack.c.b16 %v790, %v787
    %v821 = vpack.c.b16 %v791, %v788
    %v822 = vpack.c.b16 %v792, %v789
    %v823 = vpack.c.b16 %v796, %v793
    %v824 = vpack.c.b16 %v797, %v794
    %v825 = vpack.c.b16 %v798, %v795
    %v826 = vpack.c.b16 %v802, %v799
    %v827 = vpack.c.b16 %v803, %v800
    %v828 = vpack.c.b16 %v804, %v801
    %853 = vmatpush.bf16.msra.mxu0 %v826
    %854 = vmatpush.bf16.msra.mxu0 %v823
    %855 = vmatpush.bf16.msra.mxu0 %v820
    %856 = vmatpush.bf16.msra.mxu0 %v817
    %857 = vmatpush.bf16.msra.mxu0 %v814
    %858 = vmatpush.bf16.msra.mxu0 %v811
    %859 = vmatpush.bf16.msra.mxu0 %v808
    %860 = vmatpush.bf16.msra.mxu0 %v805
    %861 = vmatmul.bf16.gmra.mxu0 %v692
    %v862 = vpop.f32.mrf.mxu0
    %v863 = vadd.f32 %v431, %v862
    %v864 = vpop.f32.mrf.mxu0
    %865 = vdwg.mxu0
    %866 = vmatpush.bf16.msra.mxu0 %v827
    %867 = vmatpush.bf16.msra.mxu0 %v824
    %868 = vmatpush.bf16.msra.mxu0 %v821
    %869 = vmatpush.bf16.msra.mxu0 %v818
    %870 = vmatpush.bf16.msra.mxu0 %v815
    %871 = vmatpush.bf16.msra.mxu0 %v812
    %872 = vmatpush.bf16.msra.mxu0 %v809
    %873 = vmatpush.bf16.msra.mxu0 %v806
    %874 = vmatmul.bf16.gmra.mxu0 %v692
    %v875 = vpop.f32.mrf.mxu0
    %v876 = vadd.f32 %v432, %v875
    %v877 = vpop.f32.mrf.mxu0
    %878 = vdwg.mxu0
    %879 = vmatpush.bf16.msra.mxu0 %v828
    %880 = vmatpush.bf16.msra.mxu0 %v825
    %881 = vmatpush.bf16.msra.mxu0 %v822
    %882 = vmatpush.bf16.msra.mxu0 %v819
    %883 = vmatpush.bf16.msra.mxu0 %v816
    %884 = vmatpush.bf16.msra.mxu0 %v813
    %885 = vmatpush.bf16.msra.mxu0 %v810
    %886 = vmatpush.bf16.msra.mxu0 %v807
    %887 = vmatmul.bf16.gmra.mxu0 %v692
    %v888 = vpop.f32.mrf.mxu0
    %v889 = vadd.f32 %v433, %v888
    %v890 = vpop.f32.mrf.mxu0
    %891 = vdwg.mxu0
    %v892 = vadd.f32 %v689, %v863
    %v893 = vxor.u32 %v892, 2147483648
    %v894 = vmul.f32 %v893, 1.442695
    %v895 = vpow.pop %v894
    %v896 = vadd.f32 %v895, 1.0
    %v897 = vrcp.pop %v896
    %v898 = vmul.f32 %v896, %v897
    %v899 = vsub.f32 1.0, %v898
    %v900 = vmul.f32 %v897, %v899
    %v901 = vadd.f32 %v897, %v900
    %vm902 = vweird.f32 %v896
    %vm903 = vweird.f32 %v897
    %vm904 = vmor %vm902, %vm903
    %v905 = vsel %vm904, %v897, %v901
    %v906 = vand.u32 2147483647, %v896
    %vm907 = vcmp.eq.f32.partialorder %v906, 8.507059e+37
    %v908 = vand.u32 %v896, 2147483648
    %v909 = vor.u32 1.1754944e-38, %v908
    %v910 = vsel %vm907, %v909, %v905
    %v911 = vmul.f32 1.0, %v910
    %v912 = vadd.f32 %v690, %v876
    %v913 = vxor.u32 %v912, 2147483648
    %v914 = vmul.f32 %v913, 1.442695
    %v915 = vpow.pop %v914
    %v916 = vadd.f32 %v915, 1.0
    %v917 = vrcp.pop %v916
    %v918 = vmul.f32 %v916, %v917
    %v919 = vsub.f32 1.0, %v918
    %v920 = vmul.f32 %v917, %v919
    %v921 = vadd.f32 %v917, %v920
    %vm922 = vweird.f32 %v916
    %vm923 = vweird.f32 %v917
    %vm924 = vmor %vm922, %vm923
    %v925 = vsel %vm924, %v917, %v921
    %v926 = vand.u32 2147483647, %v916
    %vm927 = vcmp.eq.f32.partialorder %v926, 8.507059e+37
    %v928 = vand.u32 %v916, 2147483648
    %v929 = vor.u32 1.1754944e-38, %v928
    %v930 = vsel %vm927, %v929, %v925
    %v931 = vmul.f32 1.0, %v930
    %v932 = vmul.f32 %v911, %v889
    %v933 = vadd.f32 %v691, %v932
    %v934 = vtanh.pop %v933
    %v935 = vsub.f32 1.0, %v931
    %v936 = vmul.f32 %v935, %v934
    %v937 = vmul.f32 %v931, %v687
    %v938 = vadd.f32 %v936, %v937
    %939 = vst [vmem:[#allocation3 + $0x8] sm:$0xff] %v938
    %v940 = vld [vmem:[#allocation2 + $0x30] sm:$0xff]
    %v941 = vld [vmem:[#allocation2 + $0x38] sm:$0xff]
    %v942 = vld [vmem:[#allocation2 + $0x40] sm:$0xff]
    %v943 = vpack.c.bf16 %v938, %v938
    %v944 = vld [vmem:[#allocation7] sm:$0xff]
    %v945 = vld [vmem:[#allocation7 + $0x8] sm:$0xf]
    %v946 = vld [vmem:[#allocation7 + $0xc] sm:$0xff]
    %v947 = vld [vmem:[#allocation7 + $0x14] sm:$0xf]
    %v948 = vld [vmem:[#allocation7 + $0x18] sm:$0xff]
    %v949 = vld [vmem:[#allocation7 + $0x20] sm:$0xf]
    %v950 = vld [vmem:[#allocation7 + $0x24] sm:$0xff]
    %v951 = vld [vmem:[#allocation7 + $0x2c] sm:$0xf]
    %v952 = vld [vmem:[#allocation7 + $0x30] sm:$0xff]
    %v953 = vld [vmem:[#allocation7 + $0x38] sm:$0xf]
    %v954 = vld [vmem:[#allocation7 + $0x3c] sm:$0xff]
    %v955 = vld [vmem:[#allocation7 + $0x44] sm:$0xf]
    %v956 = vld [vmem:[#allocation7 + $0x48] sm:$0xff]
    %v957 = vld [vmem:[#allocation7 + $0x50] sm:$0xf]
    %v958 = vld [vmem:[#allocation7 + $0x54] sm:$0xff]
    %v959 = vld [vmem:[#allocation7 + $0x5c] sm:$0xf]
    %v960 = vld [vmem:[#allocation7 + $0x60] sm:$0xff]
    %v961 = vld [vmem:[#allocation7 + $0x68] sm:$0xf]
    %v962 = vld [vmem:[#allocation7 + $0x6c] sm:$0xff]
    %v963 = vld [vmem:[#allocation7 + $0x74] sm:$0xf]
    %v964 = vld [vmem:[#allocation7 + $0x78] sm:$0xff]
    %v965 = vld [vmem:[#allocation7 + $0x80] sm:$0xf]
    %v966 = vld [vmem:[#allocation7 + $0x84] sm:$0xff]
    %v967 = vld [vmem:[#allocation7 + $0x8c] sm:$0xf]
    %v968 = vld [vmem:[#allocation7 + $0x90] sm:$0xff]
    %v969 = vld [vmem:[#allocation7 + $0x98] sm:$0xf]
    %v970 = vld [vmem:[#allocation7 + $0x9c] sm:$0xff]
    %v971 = vld [vmem:[#allocation7 + $0xa4] sm:$0xf]
    %v972 = vld [vmem:[#allocation7 + $0xa8] sm:$0xff]
    %v973 = vld [vmem:[#allocation7 + $0xb0] sm:$0xf]
    %v974 = vld [vmem:[#allocation7 + $0xb4] sm:$0xff]
    %v975 = vld [vmem:[#allocation7 + $0xbc] sm:$0xf]
    %v1008 = vunpack.c.l.b16 %v944
    %v1009 = vunpack.c.h.b16 %v944
    %v1010 = vunpack.c.l.b16 %v945
    %v1011 = vunpack.c.l.b16 %v946
    %v1012 = vunpack.c.h.b16 %v946
    %v1013 = vunpack.c.l.b16 %v947
    %v1014 = vunpack.c.l.b16 %v948
    %v1015 = vunpack.c.h.b16 %v948
    %v1016 = vunpack.c.l.b16 %v949
    %v1017 = vunpack.c.l.b16 %v950
    %v1018 = vunpack.c.h.b16 %v950
    %v1019 = vunpack.c.l.b16 %v951
    %v1020 = vunpack.c.l.b16 %v952
    %v1021 = vunpack.c.h.b16 %v952
    %v1022 = vunpack.c.l.b16 %v953
    %v1023 = vunpack.c.l.b16 %v954
    %v1024 = vunpack.c.h.b16 %v954
    %v1025 = vunpack.c.l.b16 %v955
    %v1026 = vunpack.c.l.b16 %v956
    %v1027 = vunpack.c.h.b16 %v956
    %v1028 = vunpack.c.l.b16 %v957
    %v1029 = vunpack.c.l.b16 %v958
    %v1030 = vunpack.c.h.b16 %v958
    %v1031 = vunpack.c.l.b16 %v959
    %v1032 = vunpack.c.l.b16 %v960
    %v1033 = vunpack.c.h.b16 %v960
    %v1034 = vunpack.c.l.b16 %v961
    %v1035 = vunpack.c.l.b16 %v962
    %v1036 = vunpack.c.h.b16 %v962
    %v1037 = vunpack.c.l.b16 %v963
    %v1038 = vunpack.c.l.b16 %v964
    %v1039 = vunpack.c.h.b16 %v964
    %v1040 = vunpack.c.l.b16 %v965
    %v1041 = vunpack.c.l.b16 %v966
    %v1042 = vunpack.c.h.b16 %v966
    %v1043 = vunpack.c.l.b16 %v967
    %v1044 = vunpack.c.l.b16 %v968
    %v1045 = vunpack.c.h.b16 %v968
    %v1046 = vunpack.c.l.b16 %v969
    %v1047 = vunpack.c.l.b16 %v970
    %v1048 = vunpack.c.h.b16 %v970
    %v1049 = vunpack.c.l.b16 %v971
    %v1050 = vunpack.c.l.b16 %v972
    %v1051 = vunpack.c.h.b16 %v972
    %v1052 = vunpack.c.l.b16 %v973
    %v1053 = vunpack.c.l.b16 %v974
    %v1054 = vunpack.c.h.b16 %v974
    %v1055 = vunpack.c.l.b16 %v975
    %v1056 = vpack.c.b16 %v1011, %v1008
    %v1057 = vpack.c.b16 %v1012, %v1009
    %v1058 = vpack.c.b16 %v1013, %v1010
    %v1059 = vpack.c.b16 %v1017, %v1014
    %v1060 = vpack.c.b16 %v1018, %v1015
    %v1061 = vpack.c.b16 %v1019, %v1016
    %v1062 = vpack.c.b16 %v1023, %v1020
    %v1063 = vpack.c.b16 %v1024, %v1021
    %v1064 = vpack.c.b16 %v1025, %v1022
    %v1065 = vpack.c.b16 %v1029, %v1026
    %v1066 = vpack.c.b16 %v1030, %v1027
    %v1067 = vpack.c.b16 %v1031, %v1028
    %v1068 = vpack.c.b16 %v1035, %v1032
    %v1069 = vpack.c.b16 %v1036, %v1033
    %v1070 = vpack.c.b16 %v1037, %v1034
    %v1071 = vpack.c.b16 %v1041, %v1038
    %v1072 = vpack.c.b16 %v1042, %v1039
    %v1073 = vpack.c.b16 %v1043, %v1040
    %v1074 = vpack.c.b16 %v1047, %v1044
    %v1075 = vpack.c.b16 %v1048, %v1045
    %v1076 = vpack.c.b16 %v1049, %v1046
    %v1077 = vpack.c.b16 %v1053, %v1050
    %v1078 = vpack.c.b16 %v1054, %v1051
    %v1079 = vpack.c.b16 %v1055, %v1052
    %1104 = vmatpush.bf16.msra.mxu0 %v1077
    %1105 = vmatpush.bf16.msra.mxu0 %v1074
    %1106 = vmatpush.bf16.msra.mxu0 %v1071
    %1107 = vmatpush.bf16.msra.mxu0 %v1068
    %1108 = vmatpush.bf16.msra.mxu0 %v1065
    %1109 = vmatpush.bf16.msra.mxu0 %v1062
    %1110 = vmatpush.bf16.msra.mxu0 %v1059
    %1111 = vmatpush.bf16.msra.mxu0 %v1056
    %1112 = vmatmul.bf16.gmra.mxu0 %v943
    %v1113 = vpop.f32.mrf.mxu0
    %v1114 = vadd.f32 %v431, %v1113
    %v1115 = vpop.f32.mrf.mxu0
    %1116 = vdwg.mxu0
    %1117 = vmatpush.bf16.msra.mxu0 %v1078
    %1118 = vmatpush.bf16.msra.mxu0 %v1075
    %1119 = vmatpush.bf16.msra.mxu0 %v1072
    %1120 = vmatpush.bf16.msra.mxu0 %v1069
    %1121 = vmatpush.bf16.msra.mxu0 %v1066
    %1122 = vmatpush.bf16.msra.mxu0 %v1063
    %1123 = vmatpush.bf16.msra.mxu0 %v1060
    %1124 = vmatpush.bf16.msra.mxu0 %v1057
    %1125 = vmatmul.bf16.gmra.mxu0 %v943
    %v1126 = vpop.f32.mrf.mxu0
    %v1127 = vadd.f32 %v432, %v1126
    %v1128 = vpop.f32.mrf.mxu0
    %1129 = vdwg.mxu0
    %1130 = vmatpush.bf16.msra.mxu0 %v1079
    %1131 = vmatpush.bf16.msra.mxu0 %v1076
    %1132 = vmatpush.bf16.msra.mxu0 %v1073
    %1133 = vmatpush.bf16.msra.mxu0 %v1070
    %1134 = vmatpush.bf16.msra.mxu0 %v1067
    %1135 = vmatpush.bf16.msra.mxu0 %v1064
    %1136 = vmatpush.bf16.msra.mxu0 %v1061
    %1137 = vmatpush.bf16.msra.mxu0 %v1058
    %1138 = vmatmul.bf16.gmra.mxu0 %v943
    %v1139 = vpop.f32.mrf.mxu0
    %v1140 = vadd.f32 %v433, %v1139
    %v1141 = vpop.f32.mrf.mxu0
    %1142 = vdwg.mxu0
    %v1143 = vadd.f32 %v940, %v1114
    %v1144 = vxor.u32 %v1143, 2147483648
    %v1145 = vmul.f32 %v1144, 1.442695
    %v1146 = vpow.pop %v1145
    %v1147 = vadd.f32 %v1146, 1.0
    %v1148 = vrcp.pop %v1147
    %v1149 = vmul.f32 %v1147, %v1148
    %v1150 = vsub.f32 1.0, %v1149
    %v1151 = vmul.f32 %v1148, %v1150
    %v1152 = vadd.f32 %v1148, %v1151
    %vm1153 = vweird.f32 %v1147
    %vm1154 = vweird.f32 %v1148
    %vm1155 = vmor %vm1153, %vm1154
    %v1156 = vsel %vm1155, %v1148, %v1152
    %v1157 = vand.u32 2147483647, %v1147
    %vm1158 = vcmp.eq.f32.partialorder %v1157, 8.507059e+37
    %v1159 = vand.u32 %v1147, 2147483648
    %v1160 = vor.u32 1.1754944e-38, %v1159
    %v1161 = vsel %vm1158, %v1160, %v1156
    %v1162 = vmul.f32 1.0, %v1161
    %v1163 = vadd.f32 %v941, %v1127
    %v1164 = vxor.u32 %v1163, 2147483648
    %v1165 = vmul.f32 %v1164, 1.442695
    %v1166 = vpow.pop %v1165
    %v1167 = vadd.f32 %v1166, 1.0
    %v1168 = vrcp.pop %v1167
    %v1169 = vmul.f32 %v1167, %v1168
    %v1170 = vsub.f32 1.0, %v1169
    %v1171 = vmul.f32 %v1168, %v1170
    %v1172 = vadd.f32 %v1168, %v1171
    %vm1173 = vweird.f32 %v1167
    %vm1174 = vweird.f32 %v1168
    %vm1175 = vmor %vm1173, %vm1174
    %v1176 = vsel %vm1175, %v1168, %v1172
    %v1177 = vand.u32 2147483647, %v1167
    %vm1178 = vcmp.eq.f32.partialorder %v1177, 8.507059e+37
    %v1179 = vand.u32 %v1167, 2147483648
    %v1180 = vor.u32 1.1754944e-38, %v1179
    %v1181 = vsel %vm1178, %v1180, %v1176
    %v1182 = vmul.f32 1.0, %v1181
    %v1183 = vmul.f32 %v1162, %v1140
    %v1184 = vadd.f32 %v942, %v1183
    %v1185 = vtanh.pop %v1184
    %v1186 = vsub.f32 1.0, %v1182
    %v1187 = vmul.f32 %v1186, %v1185
    %v1188 = vmul.f32 %v1182, %v938
    %v1189 = vadd.f32 %v1187, %v1188
    %1190 = vst [vmem:[#allocation3 + $0x10] sm:$0xff] %v1189
    %v1191 = vld [vmem:[#allocation2 + $0x48] sm:$0xff]
    %v1192 = vld [vmem:[#allocation2 + $0x50] sm:$0xff]
    %v1193 = vld [vmem:[#allocation2 + $0x58] sm:$0xff]
    %v1194 = vpack.c.bf16 %v1189, %v1189
    %v1195 = vld [vmem:[#allocation7] sm:$0xff]
    %v1196 = vld [vmem:[#allocation7 + $0x8] sm:$0xf]
    %v1197 = vld [vmem:[#allocation7 + $0xc] sm:$0xff]
    %v1198 = vld [vmem:[#allocation7 + $0x14] sm:$0xf]
    %v1199 = vld [vmem:[#allocation7 + $0x18] sm:$0xff]
    %v1200 = vld [vmem:[#allocation7 + $0x20] sm:$0xf]
    %v1201 = vld [vmem:[#allocation7 + $0x24] sm:$0xff]
    %v1202 = vld [vmem:[#allocation7 + $0x2c] sm:$0xf]
    %v1203 = vld [vmem:[#allocation7 + $0x30] sm:$0xff]
    %v1204 = vld [vmem:[#allocation7 + $0x38] sm:$0xf]
    %v1205 = vld [vmem:[#allocation7 + $0x3c] sm:$0xff]
    %v1206 = vld [vmem:[#allocation7 + $0x44] sm:$0xf]
    %v1207 = vld [vmem:[#allocation7 + $0x48] sm:$0xff]
    %v1208 = vld [vmem:[#allocation7 + $0x50] sm:$0xf]
    %v1209 = vld [vmem:[#allocation7 + $0x54] sm:$0xff]
    %v1210 = vld [vmem:[#allocation7 + $0x5c] sm:$0xf]
    %v1211 = vld [vmem:[#allocation7 + $0x60] sm:$0xff]
    %v1212 = vld [vmem:[#allocation7 + $0x68] sm:$0xf]
    %v1213 = vld [vmem:[#allocation7 + $0x6c] sm:$0xff]
    %v1214 = vld [vmem:[#allocation7 + $0x74] sm:$0xf]
    %v1215 = vld [vmem:[#allocation7 + $0x78] sm:$0xff]
    %v1216 = vld [vmem:[#allocation7 + $0x80] sm:$0xf]
    %v1217 = vld [vmem:[#allocation7 + $0x84] sm:$0xff]
    %v1218 = vld [vmem:[#allocation7 + $0x8c] sm:$0xf]
    %v1219 = vld [vmem:[#allocation7 + $0x90] sm:$0xff]
    %v1220 = vld [vmem:[#allocation7 + $0x98] sm:$0xf]
    %v1221 = vld [vmem:[#allocation7 + $0x9c] sm:$0xff]
    %v1222 = vld [vmem:[#allocation7 + $0xa4] sm:$0xf]
    %v1223 = vld [vmem:[#allocation7 + $0xa8] sm:$0xff]
    %v1224 = vld [vmem:[#allocation7 + $0xb0] sm:$0xf]
    %v1225 = vld [vmem:[#allocation7 + $0xb4] sm:$0xff]
    %v1226 = vld [vmem:[#allocation7 + $0xbc] sm:$0xf]
    %v1259 = vunpack.c.l.b16 %v1195
    %v1260 = vunpack.c.h.b16 %v1195
    %v1261 = vunpack.c.l.b16 %v1196
    %v1262 = vunpack.c.l.b16 %v1197
    %v1263 = vunpack.c.h.b16 %v1197
    %v1264 = vunpack.c.l.b16 %v1198
    %v1265 = vunpack.c.l.b16 %v1199
    %v1266 = vunpack.c.h.b16 %v1199
    %v1267 = vunpack.c.l.b16 %v1200
    %v1268 = vunpack.c.l.b16 %v1201
    %v1269 = vunpack.c.h.b16 %v1201
    %v1270 = vunpack.c.l.b16 %v1202
    %v1271 = vunpack.c.l.b16 %v1203
    %v1272 = vunpack.c.h.b16 %v1203
    %v1273 = vunpack.c.l.b16 %v1204
    %v1274 = vunpack.c.l.b16 %v1205
    %v1275 = vunpack.c.h.b16 %v1205
    %v1276 = vunpack.c.l.b16 %v1206
    %v1277 = vunpack.c.l.b16 %v1207
    %v1278 = vunpack.c.h.b16 %v1207
    %v1279 = vunpack.c.l.b16 %v1208
    %v1280 = vunpack.c.l.b16 %v1209
    %v1281 = vunpack.c.h.b16 %v1209
    %v1282 = vunpack.c.l.b16 %v1210
    %v1283 = vunpack.c.l.b16 %v1211
    %v1284 = vunpack.c.h.b16 %v1211
    %v1285 = vunpack.c.l.b16 %v1212
    %v1286 = vunpack.c.l.b16 %v1213
    %v1287 = vunpack.c.h.b16 %v1213
    %v1288 = vunpack.c.l.b16 %v1214
    %v1289 = vunpack.c.l.b16 %v1215
    %v1290 = vunpack.c.h.b16 %v1215
    %v1291 = vunpack.c.l.b16 %v1216
    %v1292 = vunpack.c.l.b16 %v1217
    %v1293 = vunpack.c.h.b16 %v1217
    %v1294 = vunpack.c.l.b16 %v1218
    %v1295 = vunpack.c.l.b16 %v1219
    %v1296 = vunpack.c.h.b16 %v1219
    %v1297 = vunpack.c.l.b16 %v1220
    %v1298 = vunpack.c.l.b16 %v1221
    %v1299 = vunpack.c.h.b16 %v1221
    %v1300 = vunpack.c.l.b16 %v1222
    %v1301 = vunpack.c.l.b16 %v1223
    %v1302 = vunpack.c.h.b16 %v1223
    %v1303 = vunpack.c.l.b16 %v1224
    %v1304 = vunpack.c.l.b16 %v1225
    %v1305 = vunpack.c.h.b16 %v1225
    %v1306 = vunpack.c.l.b16 %v1226
    %v1307 = vpack.c.b16 %v1262, %v1259
    %v1308 = vpack.c.b16 %v1263, %v1260
    %v1309 = vpack.c.b16 %v1264, %v1261
    %v1310 = vpack.c.b16 %v1268, %v1265
    %v1311 = vpack.c.b16 %v1269, %v1266
    %v1312 = vpack.c.b16 %v1270, %v1267
    %v1313 = vpack.c.b16 %v1274, %v1271
    %v1314 = vpack.c.b16 %v1275, %v1272
    %v1315 = vpack.c.b16 %v1276, %v1273
    %v1316 = vpack.c.b16 %v1280, %v1277
    %v1317 = vpack.c.b16 %v1281, %v1278
    %v1318 = vpack.c.b16 %v1282, %v1279
    %v1319 = vpack.c.b16 %v1286, %v1283
    %v1320 = vpack.c.b16 %v1287, %v1284
    %v1321 = vpack.c.b16 %v1288, %v1285
    %v1322 = vpack.c.b16 %v1292, %v1289
    %v1323 = vpack.c.b16 %v1293, %v1290
    %v1324 = vpack.c.b16 %v1294, %v1291
    %v1325 = vpack.c.b16 %v1298, %v1295
    %v1326 = vpack.c.b16 %v1299, %v1296
    %v1327 = vpack.c.b16 %v1300, %v1297
    %v1328 = vpack.c.b16 %v1304, %v1301
    %v1329 = vpack.c.b16 %v1305, %v1302
    %v1330 = vpack.c.b16 %v1306, %v1303
    %1355 = vmatpush.bf16.msra.mxu0 %v1328
    %1356 = vmatpush.bf16.msra.mxu0 %v1325
    %1357 = vmatpush.bf16.msra.mxu0 %v1322
    %1358 = vmatpush.bf16.msra.mxu0 %v1319
    %1359 = vmatpush.bf16.msra.mxu0 %v1316
    %1360 = vmatpush.bf16.msra.mxu0 %v1313
    %1361 = vmatpush.bf16.msra.mxu0 %v1310
    %1362 = vmatpush.bf16.msra.mxu0 %v1307
    %1363 = vmatmul.bf16.gmra.mxu0 %v1194
    %v1364 = vpop.f32.mrf.mxu0
    %v1365 = vadd.f32 %v431, %v1364
    %v1366 = vpop.f32.mrf.mxu0
    %1367 = vdwg.mxu0
    %1368 = vmatpush.bf16.msra.mxu0 %v1329
    %1369 = vmatpush.bf16.msra.mxu0 %v1326
    %1370 = vmatpush.bf16.msra.mxu0 %v1323
    %1371 = vmatpush.bf16.msra.mxu0 %v1320
    %1372 = vmatpush.bf16.msra.mxu0 %v1317
    %1373 = vmatpush.bf16.msra.mxu0 %v1314
    %1374 = vmatpush.bf16.msra.mxu0 %v1311
    %1375 = vmatpush.bf16.msra.mxu0 %v1308
    %1376 = vmatmul.bf16.gmra.mxu0 %v1194
    %v1377 = vpop.f32.mrf.mxu0
    %v1378 = vadd.f32 %v432, %v1377
    %v1379 = vpop.f32.mrf.mxu0
    %1380 = vdwg.mxu0
    %1381 = vmatpush.bf16.msra.mxu0 %v1330
    %1382 = vmatpush.bf16.msra.mxu0 %v1327
    %1383 = vmatpush.bf16.msra.mxu0 %v1324
    %1384 = vmatpush.bf16.msra.mxu0 %v1321
    %1385 = vmatpush.bf16.msra.mxu0 %v1318
    %1386 = vmatpush.bf16.msra.mxu0 %v1315
    %1387 = vmatpush.bf16.msra.mxu0 %v1312
    %1388 = vmatpush.bf16.msra.mxu0 %v1309
    %1389 = vmatmul.bf16.gmra.mxu0 %v1194
    %v1390 = vpop.f32.mrf.mxu0
    %v1391 = vadd.f32 %v433, %v1390
    %v1392 = vpop.f32.mrf.mxu0
    %1393 = vdwg.mxu0
    %v1394 = vadd.f32 %v1191, %v1365
    %v1395 = vxor.u32 %v1394, 2147483648
    %v1396 = vmul.f32 %v1395, 1.442695
    %v1397 = vpow.pop %v1396
    %v1398 = vadd.f32 %v1397, 1.0
    %v1399 = vrcp.pop %v1398
    %v1400 = vmul.f32 %v1398, %v1399
    %v1401 = vsub.f32 1.0, %v1400
    %v1402 = vmul.f32 %v1399, %v1401
    %v1403 = vadd.f32 %v1399, %v1402
    %vm1404 = vweird.f32 %v1398
    %vm1405 = vweird.f32 %v1399
    %vm1406 = vmor %vm1404, %vm1405
    %v1407 = vsel %vm1406, %v1399, %v1403
    %v1408 = vand.u32 2147483647, %v1398
    %vm1409 = vcmp.eq.f32.partialorder %v1408, 8.507059e+37
    %v1410 = vand.u32 %v1398, 2147483648
    %v1411 = vor.u32 1.1754944e-38, %v1410
    %v1412 = vsel %vm1409, %v1411, %v1407
    %v1413 = vmul.f32 1.0, %v1412
    %v1414 = vadd.f32 %v1192, %v1378
    %v1415 = vxor.u32 %v1414, 2147483648
    %v1416 = vmul.f32 %v1415, 1.442695
    %v1417 = vpow.pop %v1416
    %v1418 = vadd.f32 %v1417, 1.0
    %v1419 = vrcp.pop %v1418
    %v1420 = vmul.f32 %v1418, %v1419
    %v1421 = vsub.f32 1.0, %v1420
    %v1422 = vmul.f32 %v1419, %v1421
    %v1423 = vadd.f32 %v1419, %v1422
    %vm1424 = vweird.f32 %v1418
    %vm1425 = vweird.f32 %v1419
    %vm1426 = vmor %vm1424, %vm1425
    %v1427 = vsel %vm1426, %v1419, %v1423
    %v1428 = vand.u32 2147483647, %v1418
    %vm1429 = vcmp.eq.f32.partialorder %v1428, 8.507059e+37
    %v1430 = vand.u32 %v1418, 2147483648
    %v1431 = vor.u32 1.1754944e-38, %v1430
    %v1432 = vsel %vm1429, %v1431, %v1427
    %v1433 = vmul.f32 1.0, %v1432
    %v1434 = vmul.f32 %v1413, %v1391
    %v1435 = vadd.f32 %v1193, %v1434
    %v1436 = vtanh.pop %v1435
    %v1437 = vsub.f32 1.0, %v1433
    %v1438 = vmul.f32 %v1437, %v1436
    %v1439 = vmul.f32 %v1433, %v1189
    %v1440 = vadd.f32 %v1438, %v1439
    %1441 = vst [vmem:[#allocation3 + $0x18] sm:$0xff] %v1440
    %v1442 = vld [vmem:[#allocation2 + $0x60] sm:$0xff]
    %v1443 = vld [vmem:[#allocation2 + $0x68] sm:$0xff]
    %v1444 = vld [vmem:[#allocation2 + $0x70] sm:$0xff]
    %v1445 = vpack.c.bf16 %v1440, %v1440
    %v1446 = vld [vmem:[#allocation7] sm:$0xff]
    %v1447 = vld [vmem:[#allocation7 + $0x8] sm:$0xf]
    %v1448 = vld [vmem:[#allocation7 + $0xc] sm:$0xff]
    %v1449 = vld [vmem:[#allocation7 + $0x14] sm:$0xf]
    %v1450 = vld [vmem:[#allocation7 + $0x18] sm:$0xff]
    %v1451 = vld [vmem:[#allocation7 + $0x20] sm:$0xf]
    %v1452 = vld [vmem:[#allocation7 + $0x24] sm:$0xff]
    %v1453 = vld [vmem:[#allocation7 + $0x2c] sm:$0xf]
    %v1454 = vld [vmem:[#allocation7 + $0x30] sm:$0xff]
    %v1455 = vld [vmem:[#allocation7 + $0x38] sm:$0xf]
    %v1456 = vld [vmem:[#allocation7 + $0x3c] sm:$0xff]
    %v1457 = vld [vmem:[#allocation7 + $0x44] sm:$0xf]
    %v1458 = vld [vmem:[#allocation7 + $0x48] sm:$0xff]
    %v1459 = vld [vmem:[#allocation7 + $0x50] sm:$0xf]
    %v1460 = vld [vmem:[#allocation7 + $0x54] sm:$0xff]
    %v1461 = vld [vmem:[#allocation7 + $0x5c] sm:$0xf]
    %v1462 = vld [vmem:[#allocation7 + $0x60] sm:$0xff]
    %v1463 = vld [vmem:[#allocation7 + $0x68] sm:$0xf]
    %v1464 = vld [vmem:[#allocation7 + $0x6c] sm:$0xff]
    %v1465 = vld [vmem:[#allocation7 + $0x74] sm:$0xf]
    %v1466 = vld [vmem:[#allocation7 + $0x78] sm:$0xff]
    %v1467 = vld [vmem:[#allocation7 + $0x80] sm:$0xf]
    %v1468 = vld [vmem:[#allocation7 + $0x84] sm:$0xff]
    %v1469 = vld [vmem:[#allocation7 + $0x8c] sm:$0xf]
    %v1470 = vld [vmem:[#allocation7 + $0x90] sm:$0xff]
    %v1471 = vld [vmem:[#allocation7 + $0x98] sm:$0xf]
    %v1472 = vld [vmem:[#allocation7 + $0x9c] sm:$0xff]
    %v1473 = vld [vmem:[#allocation7 + $0xa4] sm:$0xf]
    %v1474 = vld [vmem:[#allocation7 + $0xa8] sm:$0xff]
    %v1475 = vld [vmem:[#allocation7 + $0xb0] sm:$0xf]
    %v1476 = vld [vmem:[#allocation7 + $0xb4] sm:$0xff]
    %v1477 = vld [vmem:[#allocation7 + $0xbc] sm:$0xf]
    %v1510 = vunpack.c.l.b16 %v1446
    %v1511 = vunpack.c.h.b16 %v1446
    %v1512 = vunpack.c.l.b16 %v1447
    %v1513 = vunpack.c.l.b16 %v1448
    %v1514 = vunpack.c.h.b16 %v1448
    %v1515 = vunpack.c.l.b16 %v1449
    %v1516 = vunpack.c.l.b16 %v1450
    %v1517 = vunpack.c.h.b16 %v1450
    %v1518 = vunpack.c.l.b16 %v1451
    %v1519 = vunpack.c.l.b16 %v1452
    %v1520 = vunpack.c.h.b16 %v1452
    %v1521 = vunpack.c.l.b16 %v1453
    %v1522 = vunpack.c.l.b16 %v1454
    %v1523 = vunpack.c.h.b16 %v1454
    %v1524 = vunpack.c.l.b16 %v1455
    %v1525 = vunpack.c.l.b16 %v1456
    %v1526 = vunpack.c.h.b16 %v1456
    %v1527 = vunpack.c.l.b16 %v1457
    %v1528 = vunpack.c.l.b16 %v1458
    %v1529 = vunpack.c.h.b16 %v1458
    %v1530 = vunpack.c.l.b16 %v1459
    %v1531 = vunpack.c.l.b16 %v1460
    %v1532 = vunpack.c.h.b16 %v1460
    %v1533 = vunpack.c.l.b16 %v1461
    %v1534 = vunpack.c.l.b16 %v1462
    %v1535 = vunpack.c.h.b16 %v1462
    %v1536 = vunpack.c.l.b16 %v1463
    %v1537 = vunpack.c.l.b16 %v1464
    %v1538 = vunpack.c.h.b16 %v1464
    %v1539 = vunpack.c.l.b16 %v1465
    %v1540 = vunpack.c.l.b16 %v1466
    %v1541 = vunpack.c.h.b16 %v1466
    %v1542 = vunpack.c.l.b16 %v1467
    %v1543 = vunpack.c.l.b16 %v1468
    %v1544 = vunpack.c.h.b16 %v1468
    %v1545 = vunpack.c.l.b16 %v1469
    %v1546 = vunpack.c.l.b16 %v1470
    %v1547 = vunpack.c.h.b16 %v1470
    %v1548 = vunpack.c.l.b16 %v1471
    %v1549 = vunpack.c.l.b16 %v1472
    %v1550 = vunpack.c.h.b16 %v1472
    %v1551 = vunpack.c.l.b16 %v1473
    %v1552 = vunpack.c.l.b16 %v1474
    %v1553 = vunpack.c.h.b16 %v1474
    %v1554 = vunpack.c.l.b16 %v1475
    %v1555 = vunpack.c.l.b16 %v1476
    %v1556 = vunpack.c.h.b16 %v1476
    %v1557 = vunpack.c.l.b16 %v1477
    %v1558 = vpack.c.b16 %v1513, %v1510
    %v1559 = vpack.c.b16 %v1514, %v1511
    %v1560 = vpack.c.b16 %v1515, %v1512
    %v1561 = vpack.c.b16 %v1519, %v1516
    %v1562 = vpack.c.b16 %v1520, %v1517
    %v1563 = vpack.c.b16 %v1521, %v1518
    %v1564 = vpack.c.b16 %v1525, %v1522
    %v1565 = vpack.c.b16 %v1526, %v1523
    %v1566 = vpack.c.b16 %v1527, %v1524
    %v1567 = vpack.c.b16 %v1531, %v1528
    %v1568 = vpack.c.b16 %v1532, %v1529
    %v1569 = vpack.c.b16 %v1533, %v1530
    %v1570 = vpack.c.b16 %v1537, %v1534
    %v1571 = vpack.c.b16 %v1538, %v1535
    %v1572 = vpack.c.b16 %v1539, %v1536
    %v1573 = vpack.c.b16 %v1543, %v1540
    %v1574 = vpack.c.b16 %v1544, %v1541
    %v1575 = vpack.c.b16 %v1545, %v1542
    %v1576 = vpack.c.b16 %v1549, %v1546
    %v1577 = vpack.c.b16 %v1550, %v1547
    %v1578 = vpack.c.b16 %v1551, %v1548
    %v1579 = vpack.c.b16 %v1555, %v1552
    %v1580 = vpack.c.b16 %v1556, %v1553
    %v1581 = vpack.c.b16 %v1557, %v1554
    %1606 = vmatpush.bf16.msra.mxu0 %v1579
    %1607 = vmatpush.bf16.msra.mxu0 %v1576
    %1608 = vmatpush.bf16.msra.mxu0 %v1573
    %1609 = vmatpush.bf16.msra.mxu0 %v1570
    %1610 = vmatpush.bf16.msra.mxu0 %v1567
    %1611 = vmatpush.bf16.msra.mxu0 %v1564
    %1612 = vmatpush.bf16.msra.mxu0 %v1561
    %1613 = vmatpush.bf16.msra.mxu0 %v1558
    %1614 = vmatmul.bf16.gmra.mxu0 %v1445
    %v1615 = vpop.f32.mrf.mxu0
    %v1616 = vadd.f32 %v431, %v1615
    %v1617 = vpop.f32.mrf.mxu0
    %1618 = vdwg.mxu0
    %1619 = vmatpush.bf16.msra.mxu0 %v1580
    %1620 = vmatpush.bf16.msra.mxu0 %v1577
    %1621 = vmatpush.bf16.msra.mxu0 %v1574
    %1622 = vmatpush.bf16.msra.mxu0 %v1571
    %1623 = vmatpush.bf16.msra.mxu0 %v1568
    %1624 = vmatpush.bf16.msra.mxu0 %v1565
    %1625 = vmatpush.bf16.msra.mxu0 %v1562
    %1626 = vmatpush.bf16.msra.mxu0 %v1559
    %1627 = vmatmul.bf16.gmra.mxu0 %v1445
    %v1628 = vpop.f32.mrf.mxu0
    %v1629 = vadd.f32 %v432, %v1628
    %v1630 = vpop.f32.mrf.mxu0
    %1631 = vdwg.mxu0
    %1632 = vmatpush.bf16.msra.mxu0 %v1581
    %1633 = vmatpush.bf16.msra.mxu0 %v1578
    %1634 = vmatpush.bf16.msra.mxu0 %v1575
    %1635 = vmatpush.bf16.msra.mxu0 %v1572
    %1636 = vmatpush.bf16.msra.mxu0 %v1569
    %1637 = vmatpush.bf16.msra.mxu0 %v1566
    %1638 = vmatpush.bf16.msra.mxu0 %v1563
    %1639 = vmatpush.bf16.msra.mxu0 %v1560
    %1640 = vmatmul.bf16.gmra.mxu0 %v1445
    %v1641 = vpop.f32.mrf.mxu0
    %v1642 = vadd.f32 %v433, %v1641
    %v1643 = vpop.f32.mrf.mxu0
    %1644 = vdwg.mxu0
    %v1645 = vadd.f32 %v1442, %v1616
    %v1646 = vxor.u32 %v1645, 2147483648
    %v1647 = vmul.f32 %v1646, 1.442695
    %v1648 = vpow.pop %v1647
    %v1649 = vadd.f32 %v1648, 1.0
    %v1650 = vrcp.pop %v1649
    %v1651 = vmul.f32 %v1649, %v1650
    %v1652 = vsub.f32 1.0, %v1651
    %v1653 = vmul.f32 %v1650, %v1652
    %v1654 = vadd.f32 %v1650, %v1653
    %vm1655 = vweird.f32 %v1649
    %vm1656 = vweird.f32 %v1650
    %vm1657 = vmor %vm1655, %vm1656
    %v1658 = vsel %vm1657, %v1650, %v1654
    %v1659 = vand.u32 2147483647, %v1649
    %vm1660 = vcmp.eq.f32.partialorder %v1659, 8.507059e+37
    %v1661 = vand.u32 %v1649, 2147483648
    %v1662 = vor.u32 1.1754944e-38, %v1661
    %v1663 = vsel %vm1660, %v1662, %v1658
    %v1664 = vmul.f32 1.0, %v1663
    %v1665 = vadd.f32 %v1443, %v1629
    %v1666 = vxor.u32 %v1665, 2147483648
    %v1667 = vmul.f32 %v1666, 1.442695
    %v1668 = vpow.pop %v1667
    %v1669 = vadd.f32 %v1668, 1.0
    %v1670 = vrcp.pop %v1669
    %v1671 = vmul.f32 %v1669, %v1670
    %v1672 = vsub.f32 1.0, %v1671
    %v1673 = vmul.f32 %v1670, %v1672
    %v1674 = vadd.f32 %v1670, %v1673
    %vm1675 = vweird.f32 %v1669
    %vm1676 = vweird.f32 %v1670
    %vm1677 = vmor %vm1675, %vm1676
    %v1678 = vsel %vm1677, %v1670, %v1674
    %v1679 = vand.u32 2147483647, %v1669
    %vm1680 = vcmp.eq.f32.partialorder %v1679, 8.507059e+37
    %v1681 = vand.u32 %v1669, 2147483648
    %v1682 = vor.u32 1.1754944e-38, %v1681
    %v1683 = vsel %vm1680, %v1682, %v1678
    %v1684 = vmul.f32 1.0, %v1683
    %v1685 = vmul.f32 %v1664, %v1642
    %v1686 = vadd.f32 %v1444, %v1685
    %v1687 = vtanh.pop %v1686
    %v1688 = vsub.f32 1.0, %v1684
    %v1689 = vmul.f32 %v1688, %v1687
    %v1690 = vmul.f32 %v1684, %v1440
    %v1691 = vadd.f32 %v1689, %v1690
    %1692 = vst [vmem:[#allocation3 + $0x20] sm:$0xff] %v1691
    %v1693 = vld [vmem:[#allocation2 + $0x78] sm:$0xff]
    %v1694 = vld [vmem:[#allocation2 + $0x80] sm:$0xff]
    %v1695 = vld [vmem:[#allocation2 + $0x88] sm:$0xff]
    %v1696 = vpack.c.bf16 %v1691, %v1691
    %v1697 = vld [vmem:[#allocation7] sm:$0xff]
    %v1698 = vld [vmem:[#allocation7 + $0x8] sm:$0xf]
    %v1699 = vld [vmem:[#allocation7 + $0xc] sm:$0xff]
    %v1700 = vld [vmem:[#allocation7 + $0x14] sm:$0xf]
    %v1701 = vld [vmem:[#allocation7 + $0x18] sm:$0xff]
    %v1702 = vld [vmem:[#allocation7 + $0x20] sm:$0xf]
    %v1703 = vld [vmem:[#allocation7 + $0x24] sm:$0xff]
    %v1704 = vld [vmem:[#allocation7 + $0x2c] sm:$0xf]
    %v1705 = vld [vmem:[#allocation7 + $0x30] sm:$0xff]
    %v1706 = vld [vmem:[#allocation7 + $0x38] sm:$0xf]
    %v1707 = vld [vmem:[#allocation7 + $0x3c] sm:$0xff]
    %v1708 = vld [vmem:[#allocation7 + $0x44] sm:$0xf]
    %v1709 = vld [vmem:[#allocation7 + $0x48] sm:$0xff]
    %v1710 = vld [vmem:[#allocation7 + $0x50] sm:$0xf]
    %v1711 = vld [vmem:[#allocation7 + $0x54] sm:$0xff]
    %v1712 = vld [vmem:[#allocation7 + $0x5c] sm:$0xf]
    %v1713 = vld [vmem:[#allocation7 + $0x60] sm:$0xff]
    %v1714 = vld [vmem:[#allocation7 + $0x68] sm:$0xf]
    %v1715 = vld [vmem:[#allocation7 + $0x6c] sm:$0xff]
    %v1716 = vld [vmem:[#allocation7 + $0x74] sm:$0xf]
    %v1717 = vld [vmem:[#allocation7 + $0x78] sm:$0xff]
    %v1718 = vld [vmem:[#allocation7 + $0x80] sm:$0xf]
    %v1719 = vld [vmem:[#allocation7 + $0x84] sm:$0xff]
    %v1720 = vld [vmem:[#allocation7 + $0x8c] sm:$0xf]
    %v1721 = vld [vmem:[#allocation7 + $0x90] sm:$0xff]
    %v1722 = vld [vmem:[#allocation7 + $0x98] sm:$0xf]
    %v1723 = vld [vmem:[#allocation7 + $0x9c] sm:$0xff]
    %v1724 = vld [vmem:[#allocation7 + $0xa4] sm:$0xf]
    %v1725 = vld [vmem:[#allocation7 + $0xa8] sm:$0xff]
    %v1726 = vld [vmem:[#allocation7 + $0xb0] sm:$0xf]
    %v1727 = vld [vmem:[#allocation7 + $0xb4] sm:$0xff]
    %v1728 = vld [vmem:[#allocation7 + $0xbc] sm:$0xf]
    %v1761 = vunpack.c.l.b16 %v1697
    %v1762 = vunpack.c.h.b16 %v1697
    %v1763 = vunpack.c.l.b16 %v1698
    %v1764 = vunpack.c.l.b16 %v1699
    %v1765 = vunpack.c.h.b16 %v1699
    %v1766 = vunpack.c.l.b16 %v1700
    %v1767 = vunpack.c.l.b16 %v1701
    %v1768 = vunpack.c.h.b16 %v1701
    %v1769 = vunpack.c.l.b16 %v1702
    %v1770 = vunpack.c.l.b16 %v1703
    %v1771 = vunpack.c.h.b16 %v1703
    %v1772 = vunpack.c.l.b16 %v1704
    %v1773 = vunpack.c.l.b16 %v1705
    %v1774 = vunpack.c.h.b16 %v1705
    %v1775 = vunpack.c.l.b16 %v1706
    %v1776 = vunpack.c.l.b16 %v1707
    %v1777 = vunpack.c.h.b16 %v1707
    %v1778 = vunpack.c.l.b16 %v1708
    %v1779 = vunpack.c.l.b16 %v1709
    %v1780 = vunpack.c.h.b16 %v1709
    %v1781 = vunpack.c.l.b16 %v1710
    %v1782 = vunpack.c.l.b16 %v1711
    %v1783 = vunpack.c.h.b16 %v1711
    %v1784 = vunpack.c.l.b16 %v1712
    %v1785 = vunpack.c.l.b16 %v1713
    %v1786 = vunpack.c.h.b16 %v1713
    %v1787 = vunpack.c.l.b16 %v1714
    %v1788 = vunpack.c.l.b16 %v1715
    %v1789 = vunpack.c.h.b16 %v1715
    %v1790 = vunpack.c.l.b16 %v1716
    %v1791 = vunpack.c.l.b16 %v1717
    %v1792 = vunpack.c.h.b16 %v1717
    %v1793 = vunpack.c.l.b16 %v1718
    %v1794 = vunpack.c.l.b16 %v1719
    %v1795 = vunpack.c.h.b16 %v1719
    %v1796 = vunpack.c.l.b16 %v1720
    %v1797 = vunpack.c.l.b16 %v1721
    %v1798 = vunpack.c.h.b16 %v1721
    %v1799 = vunpack.c.l.b16 %v1722
    %v1800 = vunpack.c.l.b16 %v1723
    %v1801 = vunpack.c.h.b16 %v1723
    %v1802 = vunpack.c.l.b16 %v1724
    %v1803 = vunpack.c.l.b16 %v1725
    %v1804 = vunpack.c.h.b16 %v1725
    %v1805 = vunpack.c.l.b16 %v1726
    %v1806 = vunpack.c.l.b16 %v1727
    %v1807 = vunpack.c.h.b16 %v1727
    %v1808 = vunpack.c.l.b16 %v1728
    %v1809 = vpack.c.b16 %v1764, %v1761
    %v1810 = vpack.c.b16 %v1765, %v1762
    %v1811 = vpack.c.b16 %v1766, %v1763
    %v1812 = vpack.c.b16 %v1770, %v1767
    %v1813 = vpack.c.b16 %v1771, %v1768
    %v1814 = vpack.c.b16 %v1772, %v1769
    %v1815 = vpack.c.b16 %v1776, %v1773
    %v1816 = vpack.c.b16 %v1777, %v1774
    %v1817 = vpack.c.b16 %v1778, %v1775
    %v1818 = vpack.c.b16 %v1782, %v1779
    %v1819 = vpack.c.b16 %v1783, %v1780
    %v1820 = vpack.c.b16 %v1784, %v1781
    %v1821 = vpack.c.b16 %v1788, %v1785
    %v1822 = vpack.c.b16 %v1789, %v1786
    %v1823 = vpack.c.b16 %v1790, %v1787
    %v1824 = vpack.c.b16 %v1794, %v1791
    %v1825 = vpack.c.b16 %v1795, %v1792
    %v1826 = vpack.c.b16 %v1796, %v1793
    %v1827 = vpack.c.b16 %v1800, %v1797
    %v1828 = vpack.c.b16 %v1801, %v1798
    %v1829 = vpack.c.b16 %v1802, %v1799
    %v1830 = vpack.c.b16 %v1806, %v1803
    %v1831 = vpack.c.b16 %v1807, %v1804
    %v1832 = vpack.c.b16 %v1808, %v1805
    %1857 = vmatpush.bf16.msra.mxu0 %v1830
    %1858 = vmatpush.bf16.msra.mxu0 %v1827
    %1859 = vmatpush.bf16.msra.mxu0 %v1824
    %1860 = vmatpush.bf16.msra.mxu0 %v1821
    %1861 = vmatpush.bf16.msra.mxu0 %v1818
    %1862 = vmatpush.bf16.msra.mxu0 %v1815
    %1863 = vmatpush.bf16.msra.mxu0 %v1812
    %1864 = vmatpush.bf16.msra.mxu0 %v1809
    %1865 = vmatmul.bf16.gmra.mxu0 %v1696
    %v1866 = vpop.f32.mrf.mxu0
    %v1867 = vadd.f32 %v431, %v1866
    %v1868 = vpop.f32.mrf.mxu0
    %1869 = vdwg.mxu0
    %1870 = vmatpush.bf16.msra.mxu0 %v1831
    %1871 = vmatpush.bf16.msra.mxu0 %v1828
    %1872 = vmatpush.bf16.msra.mxu0 %v1825
    %1873 = vmatpush.bf16.msra.mxu0 %v1822
    %1874 = vmatpush.bf16.msra.mxu0 %v1819
    %1875 = vmatpush.bf16.msra.mxu0 %v1816
    %1876 = vmatpush.bf16.msra.mxu0 %v1813
    %1877 = vmatpush.bf16.msra.mxu0 %v1810
    %1878 = vmatmul.bf16.gmra.mxu0 %v1696
    %v1879 = vpop.f32.mrf.mxu0
    %v1880 = vadd.f32 %v432, %v1879
    %v1881 = vpop.f32.mrf.mxu0
    %1882 = vdwg.mxu0
    %1883 = vmatpush.bf16.msra.mxu0 %v1832
    %1884 = vmatpush.bf16.msra.mxu0 %v1829
    %1885 = vmatpush.bf16.msra.mxu0 %v1826
    %1886 = vmatpush.bf16.msra.mxu0 %v1823
    %1887 = vmatpush.bf16.msra.mxu0 %v1820
    %1888 = vmatpush.bf16.msra.mxu0 %v1817
    %1889 = vmatpush.bf16.msra.mxu0 %v1814
    %1890 = vmatpush.bf16.msra.mxu0 %v1811
    %1891 = vmatmul.bf16.gmra.mxu0 %v1696
    %v1892 = vpop.f32.mrf.mxu0
    %v1893 = vadd.f32 %v433, %v1892
    %v1894 = vpop.f32.mrf.mxu0
    %1895 = vdwg.mxu0
    %v1896 = vadd.f32 %v1693, %v1867
    %v1897 = vxor.u32 %v1896, 2147483648
    %v1898 = vmul.f32 %v1897, 1.442695
    %v1899 = vpow.pop %v1898
    %v1900 = vadd.f32 %v1899, 1.0
    %v1901 = vrcp.pop %v1900
    %v1902 = vmul.f32 %v1900, %v1901
    %v1903 = vsub.f32 1.0, %v1902
    %v1904 = vmul.f32 %v1901, %v1903
    %v1905 = vadd.f32 %v1901, %v1904
    %vm1906 = vweird.f32 %v1900
    %vm1907 = vweird.f32 %v1901
    %vm1908 = vmor %vm1906, %vm1907
    %v1909 = vsel %vm1908, %v1901, %v1905
    %v1910 = vand.u32 2147483647, %v1900
    %vm1911 = vcmp.eq.f32.partialorder %v1910, 8.507059e+37
    %v1912 = vand.u32 %v1900, 2147483648
    %v1913 = vor.u32 1.1754944e-38, %v1912
    %v1914 = vsel %vm1911, %v1913, %v1909
    %v1915 = vmul.f32 1.0, %v1914
    %v1916 = vadd.f32 %v1694, %v1880
    %v1917 = vxor.u32 %v1916, 2147483648
    %v1918 = vmul.f32 %v1917, 1.442695
    %v1919 = vpow.pop %v1918
    %v1920 = vadd.f32 %v1919, 1.0
    %v1921 = vrcp.pop %v1920
    %v1922 = vmul.f32 %v1920, %v1921
    %v1923 = vsub.f32 1.0, %v1922
    %v1924 = vmul.f32 %v1921, %v1923
    %v1925 = vadd.f32 %v1921, %v1924
    %vm1926 = vweird.f32 %v1920
    %vm1927 = vweird.f32 %v1921
    %vm1928 = vmor %vm1926, %vm1927
    %v1929 = vsel %vm1928, %v1921, %v1925
    %v1930 = vand.u32 2147483647, %v1920
    %vm1931 = vcmp.eq.f32.partialorder %v1930, 8.507059e+37
    %v1932 = vand.u32 %v1920, 2147483648
    %v1933 = vor.u32 1.1754944e-38, %v1932
    %v1934 = vsel %vm1931, %v1933, %v1929
    %v1935 = vmul.f32 1.0, %v1934
    %v1936 = vmul.f32 %v1915, %v1893
    %v1937 = vadd.f32 %v1695, %v1936
    %v1938 = vtanh.pop %v1937
    %v1939 = vsub.f32 1.0, %v1935
    %v1940 = vmul.f32 %v1939, %v1938
    %v1941 = vmul.f32 %v1935, %v1691
    %v1942 = vadd.f32 %v1940, %v1941
    %1943 = vst [vmem:[#allocation3 + $0x28] sm:$0xff] %v1942
    %v1944 = vld [vmem:[#allocation2 + $0x90] sm:$0xff]
    %v1945 = vld [vmem:[#allocation2 + $0x98] sm:$0xff]
    %v1946 = vld [vmem:[#allocation2 + $0xa0] sm:$0xff]
    %v1947 = vpack.c.bf16 %v1942, %v1942
    %v1948 = vld [vmem:[#allocation7] sm:$0xff]
    %v1949 = vld [vmem:[#allocation7 + $0x8] sm:$0xf]
    %v1950 = vld [vmem:[#allocation7 + $0xc] sm:$0xff]
    %v1951 = vld [vmem:[#allocation7 + $0x14] sm:$0xf]
    %v1952 = vld [vmem:[#allocation7 + $0x18] sm:$0xff]
    %v1953 = vld [vmem:[#allocation7 + $0x20] sm:$0xf]
    %v1954 = vld [vmem:[#allocation7 + $0x24] sm:$0xff]
    %v1955 = vld [vmem:[#allocation7 + $0x2c] sm:$0xf]
    %v1956 = vld [vmem:[#allocation7 + $0x30] sm:$0xff]
    %v1957 = vld [vmem:[#allocation7 + $0x38] sm:$0xf]
    %v1958 = vld [vmem:[#allocation7 + $0x3c] sm:$0xff]
    %v1959 = vld [vmem:[#allocation7 + $0x44] sm:$0xf]
    %v1960 = vld [vmem:[#allocation7 + $0x48] sm:$0xff]
    %v1961 = vld [vmem:[#allocation7 + $0x50] sm:$0xf]
    %v1962 = vld [vmem:[#allocation7 + $0x54] sm:$0xff]
    %v1963 = vld [vmem:[#allocation7 + $0x5c] sm:$0xf]
    %v1964 = vld [vmem:[#allocation7 + $0x60] sm:$0xff]
    %v1965 = vld [vmem:[#allocation7 + $0x68] sm:$0xf]
    %v1966 = vld [vmem:[#allocation7 + $0x6c] sm:$0xff]
    %v1967 = vld [vmem:[#allocation7 + $0x74] sm:$0xf]
    %v1968 = vld [vmem:[#allocation7 + $0x78] sm:$0xff]
    %v1969 = vld [vmem:[#allocation7 + $0x80] sm:$0xf]
    %v1970 = vld [vmem:[#allocation7 + $0x84] sm:$0xff]
    %v1971 = vld [vmem:[#allocation7 + $0x8c] sm:$0xf]
    %v1972 = vld [vmem:[#allocation7 + $0x90] sm:$0xff]
    %v1973 = vld [vmem:[#allocation7 + $0x98] sm:$0xf]
    %v1974 = vld [vmem:[#allocation7 + $0x9c] sm:$0xff]
    %v1975 = vld [vmem:[#allocation7 + $0xa4] sm:$0xf]
    %v1976 = vld [vmem:[#allocation7 + $0xa8] sm:$0xff]
    %v1977 = vld [vmem:[#allocation7 + $0xb0] sm:$0xf]
    %v1978 = vld [vmem:[#allocation7 + $0xb4] sm:$0xff]
    %v1979 = vld [vmem:[#allocation7 + $0xbc] sm:$0xf]
    %v2012 = vunpack.c.l.b16 %v1948
    %v2013 = vunpack.c.h.b16 %v1948
    %v2014 = vunpack.c.l.b16 %v1949
    %v2015 = vunpack.c.l.b16 %v1950
    %v2016 = vunpack.c.h.b16 %v1950
    %v2017 = vunpack.c.l.b16 %v1951
    %v2018 = vunpack.c.l.b16 %v1952
    %v2019 = vunpack.c.h.b16 %v1952
    %v2020 = vunpack.c.l.b16 %v1953
    %v2021 = vunpack.c.l.b16 %v1954
    %v2022 = vunpack.c.h.b16 %v1954
    %v2023 = vunpack.c.l.b16 %v1955
    %v2024 = vunpack.c.l.b16 %v1956
    %v2025 = vunpack.c.h.b16 %v1956
    %v2026 = vunpack.c.l.b16 %v1957
    %v2027 = vunpack.c.l.b16 %v1958
    %v2028 = vunpack.c.h.b16 %v1958
    %v2029 = vunpack.c.l.b16 %v1959
    %v2030 = vunpack.c.l.b16 %v1960
    %v2031 = vunpack.c.h.b16 %v1960
    %v2032 = vunpack.c.l.b16 %v1961
    %v2033 = vunpack.c.l.b16 %v1962
    %v2034 = vunpack.c.h.b16 %v1962
    %v2035 = vunpack.c.l.b16 %v1963
    %v2036 = vunpack.c.l.b16 %v1964
    %v2037 = vunpack.c.h.b16 %v1964
    %v2038 = vunpack.c.l.b16 %v1965
    %v2039 = vunpack.c.l.b16 %v1966
    %v2040 = vunpack.c.h.b16 %v1966
    %v2041 = vunpack.c.l.b16 %v1967
    %v2042 = vunpack.c.l.b16 %v1968
    %v2043 = vunpack.c.h.b16 %v1968
    %v2044 = vunpack.c.l.b16 %v1969
    %v2045 = vunpack.c.l.b16 %v1970
    %v2046 = vunpack.c.h.b16 %v1970
    %v2047 = vunpack.c.l.b16 %v1971
    %v2048 = vunpack.c.l.b16 %v1972
    %v2049 = vunpack.c.h.b16 %v1972
    %v2050 = vunpack.c.l.b16 %v1973
    %v2051 = vunpack.c.l.b16 %v1974
    %v2052 = vunpack.c.h.b16 %v1974
    %v2053 = vunpack.c.l.b16 %v1975
    %v2054 = vunpack.c.l.b16 %v1976
    %v2055 = vunpack.c.h.b16 %v1976
    %v2056 = vunpack.c.l.b16 %v1977
    %v2057 = vunpack.c.l.b16 %v1978
    %v2058 = vunpack.c.h.b16 %v1978
    %v2059 = vunpack.c.l.b16 %v1979
    %v2060 = vpack.c.b16 %v2015, %v2012
    %v2061 = vpack.c.b16 %v2016, %v2013
    %v2062 = vpack.c.b16 %v2017, %v2014
    %v2063 = vpack.c.b16 %v2021, %v2018
    %v2064 = vpack.c.b16 %v2022, %v2019
    %v2065 = vpack.c.b16 %v2023, %v2020
    %v2066 = vpack.c.b16 %v2027, %v2024
    %v2067 = vpack.c.b16 %v2028, %v2025
    %v2068 = vpack.c.b16 %v2029, %v2026
    %v2069 = vpack.c.b16 %v2033, %v2030
    %v2070 = vpack.c.b16 %v2034, %v2031
    %v2071 = vpack.c.b16 %v2035, %v2032
    %v2072 = vpack.c.b16 %v2039, %v2036
    %v2073 = vpack.c.b16 %v2040, %v2037
    %v2074 = vpack.c.b16 %v2041, %v2038
    %v2075 = vpack.c.b16 %v2045, %v2042
    %v2076 = vpack.c.b16 %v2046, %v2043
    %v2077 = vpack.c.b16 %v2047, %v2044
    %v2078 = vpack.c.b16 %v2051, %v2048
    %v2079 = vpack.c.b16 %v2052, %v2049
    %v2080 = vpack.c.b16 %v2053, %v2050
    %v2081 = vpack.c.b16 %v2057, %v2054
    %v2082 = vpack.c.b16 %v2058, %v2055
    %v2083 = vpack.c.b16 %v2059, %v2056
    %2108 = vmatpush.bf16.msra.mxu0 %v2081
    %2109 = vmatpush.bf16.msra.mxu0 %v2078
    %2110 = vmatpush.bf16.msra.mxu0 %v2075
    %2111 = vmatpush.bf16.msra.mxu0 %v2072
    %2112 = vmatpush.bf16.msra.mxu0 %v2069
    %2113 = vmatpush.bf16.msra.mxu0 %v2066
    %2114 = vmatpush.bf16.msra.mxu0 %v2063
    %2115 = vmatpush.bf16.msra.mxu0 %v2060
    %2116 = vmatmul.bf16.gmra.mxu0 %v1947
    %v2117 = vpop.f32.mrf.mxu0
    %v2118 = vadd.f32 %v431, %v2117
    %v2119 = vpop.f32.mrf.mxu0
    %2120 = vdwg.mxu0
    %2121 = vmatpush.bf16.msra.mxu0 %v2082
    %2122 = vmatpush.bf16.msra.mxu0 %v2079
    %2123 = vmatpush.bf16.msra.mxu0 %v2076
    %2124 = vmatpush.bf16.msra.mxu0 %v2073
    %2125 = vmatpush.bf16.msra.mxu0 %v2070
    %2126 = vmatpush.bf16.msra.mxu0 %v2067
    %2127 = vmatpush.bf16.msra.mxu0 %v2064
    %2128 = vmatpush.bf16.msra.mxu0 %v2061
    %2129 = vmatmul.bf16.gmra.mxu0 %v1947
    %v2130 = vpop.f32.mrf.mxu0
    %v2131 = vadd.f32 %v432, %v2130
    %v2132 = vpop.f32.mrf.mxu0
    %2133 = vdwg.mxu0
    %2134 = vmatpush.bf16.msra.mxu0 %v2083
    %2135 = vmatpush.bf16.msra.mxu0 %v2080
    %2136 = vmatpush.bf16.msra.mxu0 %v2077
    %2137 = vmatpush.bf16.msra.mxu0 %v2074
    %2138 = vmatpush.bf16.msra.mxu0 %v2071
    %2139 = vmatpush.bf16.msra.mxu0 %v2068
    %2140 = vmatpush.bf16.msra.mxu0 %v2065
    %2141 = vmatpush.bf16.msra.mxu0 %v2062
    %2142 = vmatmul.bf16.gmra.mxu0 %v1947
    %v2143 = vpop.f32.mrf.mxu0
    %v2144 = vadd.f32 %v433, %v2143
    %v2145 = vpop.f32.mrf.mxu0
    %2146 = vdwg.mxu0
    %v2147 = vadd.f32 %v1944, %v2118
    %v2148 = vxor.u32 %v2147, 2147483648
    %v2149 = vmul.f32 %v2148, 1.442695
    %v2150 = vpow.pop %v2149
    %v2151 = vadd.f32 %v2150, 1.0
    %v2152 = vrcp.pop %v2151
    %v2153 = vmul.f32 %v2151, %v2152
    %v2154 = vsub.f32 1.0, %v2153
    %v2155 = vmul.f32 %v2152, %v2154
    %v2156 = vadd.f32 %v2152, %v2155
    %vm2157 = vweird.f32 %v2151
    %vm2158 = vweird.f32 %v2152
    %vm2159 = vmor %vm2157, %vm2158
    %v2160 = vsel %vm2159, %v2152, %v2156
    %v2161 = vand.u32 2147483647, %v2151
    %vm2162 = vcmp.eq.f32.partialorder %v2161, 8.507059e+37
    %v2163 = vand.u32 %v2151, 2147483648
    %v2164 = vor.u32 1.1754944e-38, %v2163
    %v2165 = vsel %vm2162, %v2164, %v2160
    %v2166 = vmul.f32 1.0, %v2165
    %v2167 = vadd.f32 %v1945, %v2131
    %v2168 = vxor.u32 %v2167, 2147483648
    %v2169 = vmul.f32 %v2168, 1.442695
    %v2170 = vpow.pop %v2169
    %v2171 = vadd.f32 %v2170, 1.0
    %v2172 = vrcp.pop %v2171
    %v2173 = vmul.f32 %v2171, %v2172
    %v2174 = vsub.f32 1.0, %v2173
    %v2175 = vmul.f32 %v2172, %v2174
    %v2176 = vadd.f32 %v2172, %v2175
    %vm2177 = vweird.f32 %v2171
    %vm2178 = vweird.f32 %v2172
    %vm2179 = vmor %vm2177, %vm2178
    %v2180 = vsel %vm2179, %v2172, %v2176
    %v2181 = vand.u32 2147483647, %v2171
    %vm2182 = vcmp.eq.f32.partialorder %v2181, 8.507059e+37
    %v2183 = vand.u32 %v2171, 2147483648
    %v2184 = vor.u32 1.1754944e-38, %v2183
    %v2185 = vsel %vm2182, %v2184, %v2180
    %v2186 = vmul.f32 1.0, %v2185
    %v2187 = vmul.f32 %v2166, %v2144
    %v2188 = vadd.f32 %v1946, %v2187
    %v2189 = vtanh.pop %v2188
    %v2190 = vsub.f32 1.0, %v2186
    %v2191 = vmul.f32 %v2190, %v2189
    %v2192 = vmul.f32 %v2186, %v1942
    %v2193 = vadd.f32 %v2191, %v2192
    %2194 = vst [vmem:[#allocation3 + $0x30] sm:$0xff] %v2193
    %v2195 = vld [vmem:[#allocation2 + $0xa8] sm:$0xff]
    %v2196 = vld [vmem:[#allocation2 + $0xb0] sm:$0xff]
    %v2197 = vld [vmem:[#allocation2 + $0xb8] sm:$0xff]
    %v2198 = vpack.c.bf16 %v2193, %v2193
    %v2199 = vld [vmem:[#allocation7] sm:$0xff]
    %v2200 = vld [vmem:[#allocation7 + $0x8] sm:$0xf]
    %v2201 = vld [vmem:[#allocation7 + $0xc] sm:$0xff]
    %v2202 = vld [vmem:[#allocation7 + $0x14] sm:$0xf]
    %v2203 = vld [vmem:[#allocation7 + $0x18] sm:$0xff]
    %v2204 = vld [vmem:[#allocation7 + $0x20] sm:$0xf]
    %v2205 = vld [vmem:[#allocation7 + $0x24] sm:$0xff]
    %v2206 = vld [vmem:[#allocation7 + $0x2c] sm:$0xf]
    %v2207 = vld [vmem:[#allocation7 + $0x30] sm:$0xff]
    %v2208 = vld [vmem:[#allocation7 + $0x38] sm:$0xf]
    %v2209 = vld [vmem:[#allocation7 + $0x3c] sm:$0xff]
    %v2210 = vld [vmem:[#allocation7 + $0x44] sm:$0xf]
    %v2211 = vld [vmem:[#allocation7 + $0x48] sm:$0xff]
    %v2212 = vld [vmem:[#allocation7 + $0x50] sm:$0xf]
    %v2213 = vld [vmem:[#allocation7 + $0x54] sm:$0xff]
    %v2214 = vld [vmem:[#allocation7 + $0x5c] sm:$0xf]
    %v2215 = vld [vmem:[#allocation7 + $0x60] sm:$0xff]
    %v2216 = vld [vmem:[#allocation7 + $0x68] sm:$0xf]
    %v2217 = vld [vmem:[#allocation7 + $0x6c] sm:$0xff]
    %v2218 = vld [vmem:[#allocation7 + $0x74] sm:$0xf]
    %v2219 = vld [vmem:[#allocation7 + $0x78] sm:$0xff]
    %v2220 = vld [vmem:[#allocation7 + $0x80] sm:$0xf]
    %v2221 = vld [vmem:[#allocation7 + $0x84] sm:$0xff]
    %v2222 = vld [vmem:[#allocation7 + $0x8c] sm:$0xf]
    %v2223 = vld [vmem:[#allocation7 + $0x90] sm:$0xff]
    %v2224 = vld [vmem:[#allocation7 + $0x98] sm:$0xf]
    %v2225 = vld [vmem:[#allocation7 + $0x9c] sm:$0xff]
    %v2226 = vld [vmem:[#allocation7 + $0xa4] sm:$0xf]
    %v2227 = vld [vmem:[#allocation7 + $0xa8] sm:$0xff]
    %v2228 = vld [vmem:[#allocation7 + $0xb0] sm:$0xf]
    %v2229 = vld [vmem:[#allocation7 + $0xb4] sm:$0xff]
    %v2230 = vld [vmem:[#allocation7 + $0xbc] sm:$0xf]
    %v2263 = vunpack.c.l.b16 %v2199
    %v2264 = vunpack.c.h.b16 %v2199
    %v2265 = vunpack.c.l.b16 %v2200
    %v2266 = vunpack.c.l.b16 %v2201
    %v2267 = vunpack.c.h.b16 %v2201
    %v2268 = vunpack.c.l.b16 %v2202
    %v2269 = vunpack.c.l.b16 %v2203
    %v2270 = vunpack.c.h.b16 %v2203
    %v2271 = vunpack.c.l.b16 %v2204
    %v2272 = vunpack.c.l.b16 %v2205
    %v2273 = vunpack.c.h.b16 %v2205
    %v2274 = vunpack.c.l.b16 %v2206
    %v2275 = vunpack.c.l.b16 %v2207
    %v2276 = vunpack.c.h.b16 %v2207
    %v2277 = vunpack.c.l.b16 %v2208
    %v2278 = vunpack.c.l.b16 %v2209
    %v2279 = vunpack.c.h.b16 %v2209
    %v2280 = vunpack.c.l.b16 %v2210
    %v2281 = vunpack.c.l.b16 %v2211
    %v2282 = vunpack.c.h.b16 %v2211
    %v2283 = vunpack.c.l.b16 %v2212
    %v2284 = vunpack.c.l.b16 %v2213
    %v2285 = vunpack.c.h.b16 %v2213
    %v2286 = vunpack.c.l.b16 %v2214
    %v2287 = vunpack.c.l.b16 %v2215
    %v2288 = vunpack.c.h.b16 %v2215
    %v2289 = vunpack.c.l.b16 %v2216
    %v2290 = vunpack.c.l.b16 %v2217
    %v2291 = vunpack.c.h.b16 %v2217
    %v2292 = vunpack.c.l.b16 %v2218
    %v2293 = vunpack.c.l.b16 %v2219
    %v2294 = vunpack.c.h.b16 %v2219
    %v2295 = vunpack.c.l.b16 %v2220
    %v2296 = vunpack.c.l.b16 %v2221
    %v2297 = vunpack.c.h.b16 %v2221
    %v2298 = vunpack.c.l.b16 %v2222
    %v2299 = vunpack.c.l.b16 %v2223
    %v2300 = vunpack.c.h.b16 %v2223
    %v2301 = vunpack.c.l.b16 %v2224
    %v2302 = vunpack.c.l.b16 %v2225
    %v2303 = vunpack.c.h.b16 %v2225
    %v2304 = vunpack.c.l.b16 %v2226
    %v2305 = vunpack.c.l.b16 %v2227
    %v2306 = vunpack.c.h.b16 %v2227
    %v2307 = vunpack.c.l.b16 %v2228
    %v2308 = vunpack.c.l.b16 %v2229
    %v2309 = vunpack.c.h.b16 %v2229
    %v2310 = vunpack.c.l.b16 %v2230
    %v2311 = vpack.c.b16 %v2266, %v2263
    %v2312 = vpack.c.b16 %v2267, %v2264
    %v2313 = vpack.c.b16 %v2268, %v2265
    %v2314 = vpack.c.b16 %v2272, %v2269
    %v2315 = vpack.c.b16 %v2273, %v2270
    %v2316 = vpack.c.b16 %v2274, %v2271
    %v2317 = vpack.c.b16 %v2278, %v2275
    %v2318 = vpack.c.b16 %v2279, %v2276
    %v2319 = vpack.c.b16 %v2280, %v2277
    %v2320 = vpack.c.b16 %v2284, %v2281
    %v2321 = vpack.c.b16 %v2285, %v2282
    %v2322 = vpack.c.b16 %v2286, %v2283
    %v2323 = vpack.c.b16 %v2290, %v2287
    %v2324 = vpack.c.b16 %v2291, %v2288
    %v2325 = vpack.c.b16 %v2292, %v2289
    %v2326 = vpack.c.b16 %v2296, %v2293
    %v2327 = vpack.c.b16 %v2297, %v2294
    %v2328 = vpack.c.b16 %v2298, %v2295
    %v2329 = vpack.c.b16 %v2302, %v2299
    %v2330 = vpack.c.b16 %v2303, %v2300
    %v2331 = vpack.c.b16 %v2304, %v2301
    %v2332 = vpack.c.b16 %v2308, %v2305
    %v2333 = vpack.c.b16 %v2309, %v2306
    %v2334 = vpack.c.b16 %v2310, %v2307
    %2359 = vmatpush.bf16.msra.mxu0 %v2332
    %2360 = vmatpush.bf16.msra.mxu0 %v2329
    %2361 = vmatpush.bf16.msra.mxu0 %v2326
    %2362 = vmatpush.bf16.msra.mxu0 %v2323
    %2363 = vmatpush.bf16.msra.mxu0 %v2320
    %2364 = vmatpush.bf16.msra.mxu0 %v2317
    %2365 = vmatpush.bf16.msra.mxu0 %v2314
    %2366 = vmatpush.bf16.msra.mxu0 %v2311
    %2367 = vmatmul.bf16.gmra.mxu0 %v2198
    %v2368 = vpop.f32.mrf.mxu0
    %v2369 = vadd.f32 %v431, %v2368
    %v2370 = vpop.f32.mrf.mxu0
    %2371 = vdwg.mxu0
    %2372 = vmatpush.bf16.msra.mxu0 %v2333
    %2373 = vmatpush.bf16.msra.mxu0 %v2330
    %2374 = vmatpush.bf16.msra.mxu0 %v2327
    %2375 = vmatpush.bf16.msra.mxu0 %v2324
    %2376 = vmatpush.bf16.msra.mxu0 %v2321
    %2377 = vmatpush.bf16.msra.mxu0 %v2318
    %2378 = vmatpush.bf16.msra.mxu0 %v2315
    %2379 = vmatpush.bf16.msra.mxu0 %v2312
    %2380 = vmatmul.bf16.gmra.mxu0 %v2198
    %v2381 = vpop.f32.mrf.mxu0
    %v2382 = vadd.f32 %v432, %v2381
    %v2383 = vpop.f32.mrf.mxu0
    %2384 = vdwg.mxu0
    %2385 = vmatpush.bf16.msra.mxu0 %v2334
    %2386 = vmatpush.bf16.msra.mxu0 %v2331
    %2387 = vmatpush.bf16.msra.mxu0 %v2328
    %2388 = vmatpush.bf16.msra.mxu0 %v2325
    %2389 = vmatpush.bf16.msra.mxu0 %v2322
    %2390 = vmatpush.bf16.msra.mxu0 %v2319
    %2391 = vmatpush.bf16.msra.mxu0 %v2316
    %2392 = vmatpush.bf16.msra.mxu0 %v2313
    %2393 = vmatmul.bf16.gmra.mxu0 %v2198
    %v2394 = vpop.f32.mrf.mxu0
    %v2395 = vadd.f32 %v433, %v2394
    %v2396 = vpop.f32.mrf.mxu0
    %2397 = vdwg.mxu0
    %v2398 = vadd.f32 %v2195, %v2369
    %v2399 = vxor.u32 %v2398, 2147483648
    %v2400 = vmul.f32 %v2399, 1.442695
    %v2401 = vpow.pop %v2400
    %v2402 = vadd.f32 %v2401, 1.0
    %v2403 = vrcp.pop %v2402
    %v2404 = vmul.f32 %v2402, %v2403
    %v2405 = vsub.f32 1.0, %v2404
    %v2406 = vmul.f32 %v2403, %v2405
    %v2407 = vadd.f32 %v2403, %v2406
    %vm2408 = vweird.f32 %v2402
    %vm2409 = vweird.f32 %v2403
    %vm2410 = vmor %vm2408, %vm2409
    %v2411 = vsel %vm2410, %v2403, %v2407
    %v2412 = vand.u32 2147483647, %v2402
    %vm2413 = vcmp.eq.f32.partialorder %v2412, 8.507059e+37
    %v2414 = vand.u32 %v2402, 2147483648
    %v2415 = vor.u32 1.1754944e-38, %v2414
    %v2416 = vsel %vm2413, %v2415, %v2411
    %v2417 = vmul.f32 1.0, %v2416
    %v2418 = vadd.f32 %v2196, %v2382
    %v2419 = vxor.u32 %v2418, 2147483648
    %v2420 = vmul.f32 %v2419, 1.442695
    %v2421 = vpow.pop %v2420
    %v2422 = vadd.f32 %v2421, 1.0
    %v2423 = vrcp.pop %v2422
    %v2424 = vmul.f32 %v2422, %v2423
    %v2425 = vsub.f32 1.0, %v2424
    %v2426 = vmul.f32 %v2423, %v2425
    %v2427 = vadd.f32 %v2423, %v2426
    %vm2428 = vweird.f32 %v2422
    %vm2429 = vweird.f32 %v2423
    %vm2430 = vmor %vm2428, %vm2429
    %v2431 = vsel %vm2430, %v2423, %v2427
    %v2432 = vand.u32 2147483647, %v2422
    %vm2433 = vcmp.eq.f32.partialorder %v2432, 8.507059e+37
    %v2434 = vand.u32 %v2422, 2147483648
    %v2435 = vor.u32 1.1754944e-38, %v2434
    %v2436 = vsel %vm2433, %v2435, %v2431
    %v2437 = vmul.f32 1.0, %v2436
    %v2438 = vmul.f32 %v2417, %v2395
    %v2439 = vadd.f32 %v2197, %v2438
    %v2440 = vtanh.pop %v2439
    %v2441 = vsub.f32 1.0, %v2437
    %v2442 = vmul.f32 %v2441, %v2440
    %v2443 = vmul.f32 %v2437, %v2193
    %v2444 = vadd.f32 %v2442, %v2443
    %2445 = vst [vmem:[#allocation3 + $0x38] sm:$0xff] %v2444
    %2446 = vst [vmem:[#allocation10] sm:$0xff] %v2444
    %v2447 = vld [vmem:[#allocation3] sm:$0xff]
    %v2448 = vld [vmem:[#allocation3 + $0x8] sm:$0xff]
    %v2449 = vld [vmem:[#allocation3 + $0x10] sm:$0xff]
    %v2450 = vld [vmem:[#allocation3 + $0x18] sm:$0xff]
    %v2451 = vld [vmem:[#allocation3 + $0x20] sm:$0xff]
    %v2452 = vld [vmem:[#allocation3 + $0x28] sm:$0xff]
    %v2453 = vld [vmem:[#allocation3 + $0x30] sm:$0xff]
    %v2454 = vld [vmem:[#allocation3 + $0x38] sm:$0xff]
    %v2455 = vpack.c.bf16 %v2448, %v2447
    %v2456 = vpack.c.bf16 %v2450, %v2449
    %v2457 = vpack.c.bf16 %v2452, %v2451
    %v2458 = vpack.c.bf16 %v2454, %v2453
    %v2459 = vld [vmem:[%s8] sm:$0xf]
    %v2460 = vld [vmem:[%s8 + $0x4] sm:$0xf]
    %v2461 = vld [vmem:[%s8 + $0x8] sm:$0xf]
    %v2462 = vld [vmem:[%s8 + $0xc] sm:$0xf]
    %v2463 = vld [vmem:[%s8 + $0x10] sm:$0xf]
    %v2464 = vld [vmem:[%s8 + $0x14] sm:$0xf]
    %v2465 = vld [vmem:[%s8 + $0x18] sm:$0xf]
    %v2466 = vld [vmem:[%s8 + $0x1c] sm:$0xf]
    %v2467 = vld [vmem:[%s8 + $0x20] sm:$0xf]
    %v2468 = vld [vmem:[%s8 + $0x24] sm:$0xf]
    %v2469 = vld [vmem:[%s8 + $0x28] sm:$0xf]
    %v2470 = vld [vmem:[%s8 + $0x2c] sm:$0xf]
    %v2471 = vld [vmem:[%s8 + $0x30] sm:$0xf]
    %v2472 = vld [vmem:[%s8 + $0x34] sm:$0xf]
    %v2473 = vld [vmem:[%s8 + $0x38] sm:$0xf]
    %v2474 = vld [vmem:[%s8 + $0x3c] sm:$0xf]
    %v2475 = vld [vmem:[%s9] sm:$0x1]
    %v2477 = vperm.slane %v2475, 0
    %v2495 = vunpack.c.l.b16 %v2459
    %v2496 = vunpack.c.l.b16 %v2460
    %v2497 = vunpack.c.l.b16 %v2461
    %v2498 = vunpack.c.l.b16 %v2462
    %v2499 = vunpack.c.l.b16 %v2463
    %v2500 = vunpack.c.l.b16 %v2464
    %v2501 = vunpack.c.l.b16 %v2465
    %v2502 = vunpack.c.l.b16 %v2466
    %v2503 = vunpack.c.l.b16 %v2467
    %v2504 = vunpack.c.l.b16 %v2468
    %v2505 = vunpack.c.l.b16 %v2469
    %v2506 = vunpack.c.l.b16 %v2470
    %v2507 = vunpack.c.l.b16 %v2471
    %v2508 = vunpack.c.l.b16 %v2472
    %v2509 = vunpack.c.l.b16 %v2473
    %v2510 = vunpack.c.l.b16 %v2474
    %v2511 = vpack.c.b16 %v2496, %v2495
    %v2512 = vpack.c.b16 %v2498, %v2497
    %v2513 = vpack.c.b16 %v2500, %v2499
    %v2514 = vpack.c.b16 %v2502, %v2501
    %v2515 = vpack.c.b16 %v2504, %v2503
    %v2516 = vpack.c.b16 %v2506, %v2505
    %v2517 = vpack.c.b16 %v2508, %v2507
    %v2518 = vpack.c.b16 %v2510, %v2509
    %2527 = vmatpush.bf16.msra.mxu0 %v2518
    %2528 = vmatpush.bf16.msra.mxu0 %v2517
    %2529 = vmatpush.bf16.msra.mxu0 %v2516
    %2530 = vmatpush.bf16.msra.mxu0 %v2515
    %2531 = vmatpush.bf16.msra.mxu0 %v2514
    %2532 = vmatpush.bf16.msra.mxu0 %v2513
    %2533 = vmatpush.bf16.msra.mxu0 %v2512
    %2534 = vmatpush.bf16.msra.mxu0 %v2511
    %2535 = vmatmul.bf16.gmra.mxu0 %v2455
    %v2536 = vpop.f32.mrf.mxu0
    %v2537 = vadd.f32 %v2477, %v2536
    %v2538 = vpop.f32.mrf.mxu0
    %v2539 = vadd.f32 %v2477, %v2538
    %2540 = vmatmul.bf16.gmra.mxu0 %v2456
    %v2541 = vpop.f32.mrf.mxu0
    %v2542 = vadd.f32 %v2477, %v2541
    %v2543 = vpop.f32.mrf.mxu0
    %v2544 = vadd.f32 %v2477, %v2543
    %2545 = vmatmul.bf16.gmra.mxu0 %v2457
    %v2546 = vpop.f32.mrf.mxu0
    %v2547 = vadd.f32 %v2477, %v2546
    %v2548 = vpop.f32.mrf.mxu0
    %v2549 = vadd.f32 %v2477, %v2548
    %2550 = vmatmul.bf16.gmra.mxu0 %v2458
    %v2551 = vpop.f32.mrf.mxu0
    %v2552 = vadd.f32 %v2477, %v2551
    %v2553 = vpop.f32.mrf.mxu0
    %v2554 = vadd.f32 %v2477, %v2553
    %2555 = vdwg.mxu0
    %2556 = vmax.xlane.f32.xlu0 %v2537
    %v2557 = vpop.xlane.xlu0 %2556
    %2558 = vmax.xlane.f32.xlu0 %v2539
    %v2559 = vpop.xlane.xlu0 %2558
    %2560 = vmax.xlane.f32.xlu0 %v2542
    %v2561 = vpop.xlane.xlu0 %2560
    %2562 = vmax.xlane.f32.xlu0 %v2544
    %v2563 = vpop.xlane.xlu0 %2562
    %2564 = vmax.xlane.f32.xlu0 %v2547
    %v2565 = vpop.xlane.xlu0 %2564
    %2566 = vmax.xlane.f32.xlu0 %v2549
    %v2567 = vpop.xlane.xlu0 %2566
    %2568 = vmax.xlane.f32.xlu0 %v2552
    %v2569 = vpop.xlane.xlu0 %2568
    %2570 = vmax.xlane.f32.xlu0 %v2554
    %v2571 = vpop.xlane.xlu0 %2570
    %v2572 = vsub.f32 %v2537, %v2557
    %v2573 = vsub.f32 %v2539, %v2559
    %v2574 = vsub.f32 %v2542, %v2561
    %v2575 = vsub.f32 %v2544, %v2563
    %v2576 = vsub.f32 %v2547, %v2565
    %v2577 = vsub.f32 %v2549, %v2567
    %v2578 = vsub.f32 %v2552, %v2569
    %v2579 = vsub.f32 %v2554, %v2571
    %v2580 = vmul.f32 %v2572, 1.442695
    %v2581 = vpow.pop %v2580
    %v2582 = vmul.f32 %v2573, 1.442695
    %v2583 = vpow.pop %v2582
    %v2584 = vmul.f32 %v2574, 1.442695
    %v2585 = vpow.pop %v2584
    %v2586 = vmul.f32 %v2575, 1.442695
    %v2587 = vpow.pop %v2586
    %v2588 = vmul.f32 %v2576, 1.442695
    %v2589 = vpow.pop %v2588
    %v2590 = vmul.f32 %v2577, 1.442695
    %v2591 = vpow.pop %v2590
    %v2592 = vmul.f32 %v2578, 1.442695
    %v2593 = vpow.pop %v2592
    %v2594 = vmul.f32 %v2579, 1.442695
    %v2595 = vpow.pop %v2594
    %2596 = vadd.xlane.f32.xlu0 %v2581
    %v2597 = vpop.xlane.xlu0 %2596
    %2598 = vadd.xlane.f32.xlu0 %v2583
    %v2599 = vpop.xlane.xlu0 %2598
    %2600 = vadd.xlane.f32.xlu0 %v2585
    %v2601 = vpop.xlane.xlu0 %2600
    %2602 = vadd.xlane.f32.xlu0 %v2587
    %v2603 = vpop.xlane.xlu0 %2602
    %2604 = vadd.xlane.f32.xlu0 %v2589
    %v2605 = vpop.xlane.xlu0 %2604
    %2606 = vadd.xlane.f32.xlu0 %v2591
    %v2607 = vpop.xlane.xlu0 %2606
    %2608 = vadd.xlane.f32.xlu0 %v2593
    %v2609 = vpop.xlane.xlu0 %2608
    %2610 = vadd.xlane.f32.xlu0 %v2595
    %v2611 = vpop.xlane.xlu0 %2610
    %v2612 = vrcp.pop %v2597
    %v2613 = vmul.f32 %v2597, %v2612
    %v2614 = vsub.f32 1.0, %v2613
    %v2615 = vmul.f32 %v2612, %v2614
    %v2616 = vadd.f32 %v2612, %v2615
    %vm2617 = vweird.f32 %v2597
    %vm2618 = vweird.f32 %v2612
    %vm2619 = vmor %vm2617, %vm2618
    %v2620 = vsel %vm2619, %v2612, %v2616
    %v2621 = vand.u32 2147483647, %v2597
    %vm2622 = vcmp.eq.f32.partialorder %v2621, 8.507059e+37
    %v2623 = vand.u32 %v2597, 2147483648
    %v2624 = vor.u32 1.1754944e-38, %v2623
    %v2625 = vsel %vm2622, %v2624, %v2620
    %v2626 = vmul.f32 %v2581, %v2625
    %v2627 = vrcp.pop %v2599
    %v2628 = vmul.f32 %v2599, %v2627
    %v2629 = vsub.f32 1.0, %v2628
    %v2630 = vmul.f32 %v2627, %v2629
    %v2631 = vadd.f32 %v2627, %v2630
    %vm2632 = vweird.f32 %v2599
    %vm2633 = vweird.f32 %v2627
    %vm2634 = vmor %vm2632, %vm2633
    %v2635 = vsel %vm2634, %v2627, %v2631
    %v2636 = vand.u32 2147483647, %v2599
    %vm2637 = vcmp.eq.f32.partialorder %v2636, 8.507059e+37
    %v2638 = vand.u32 %v2599, 2147483648
    %v2639 = vor.u32 1.1754944e-38, %v2638
    %v2640 = vsel %vm2637, %v2639, %v2635
    %v2641 = vmul.f32 %v2583, %v2640
    %v2642 = vrcp.pop %v2601
    %v2643 = vmul.f32 %v2601, %v2642
    %v2644 = vsub.f32 1.0, %v2643
    %v2645 = vmul.f32 %v2642, %v2644
    %v2646 = vadd.f32 %v2642, %v2645
    %vm2647 = vweird.f32 %v2601
    %vm2648 = vweird.f32 %v2642
    %vm2649 = vmor %vm2647, %vm2648
    %v2650 = vsel %vm2649, %v2642, %v2646
    %v2651 = vand.u32 2147483647, %v2601
    %vm2652 = vcmp.eq.f32.partialorder %v2651, 8.507059e+37
    %v2653 = vand.u32 %v2601, 2147483648
    %v2654 = vor.u32 1.1754944e-38, %v2653
    %v2655 = vsel %vm2652, %v2654, %v2650
    %v2656 = vmul.f32 %v2585, %v2655
    %v2657 = vrcp.pop %v2603
    %v2658 = vmul.f32 %v2603, %v2657
    %v2659 = vsub.f32 1.0, %v2658
    %v2660 = vmul.f32 %v2657, %v2659
    %v2661 = vadd.f32 %v2657, %v2660
    %vm2662 = vweird.f32 %v2603
    %vm2663 = vweird.f32 %v2657
    %vm2664 = vmor %vm2662, %vm2663
    %v2665 = vsel %vm2664, %v2657, %v2661
    %v2666 = vand.u32 2147483647, %v2603
    %vm2667 = vcmp.eq.f32.partialorder %v2666, 8.507059e+37
    %v2668 = vand.u32 %v2603, 2147483648
    %v2669 = vor.u32 1.1754944e-38, %v2668
    %v2670 = vsel %vm2667, %v2669, %v2665
    %v2671 = vmul.f32 %v2587, %v2670
    %v2672 = vrcp.pop %v2605
    %v2673 = vmul.f32 %v2605, %v2672
    %v2674 = vsub.f32 1.0, %v2673
    %v2675 = vmul.f32 %v2672, %v2674
    %v2676 = vadd.f32 %v2672, %v2675
    %vm2677 = vweird.f32 %v2605
    %vm2678 = vweird.f32 %v2672
    %vm2679 = vmor %vm2677, %vm2678
    %v2680 = vsel %vm2679, %v2672, %v2676
    %v2681 = vand.u32 2147483647, %v2605
    %vm2682 = vcmp.eq.f32.partialorder %v2681, 8.507059e+37
    %v2683 = vand.u32 %v2605, 2147483648
    %v2684 = vor.u32 1.1754944e-38, %v2683
    %v2685 = vsel %vm2682, %v2684, %v2680
    %v2686 = vmul.f32 %v2589, %v2685
    %v2687 = vrcp.pop %v2607
    %v2688 = vmul.f32 %v2607, %v2687
    %v2689 = vsub.f32 1.0, %v2688
    %v2690 = vmul.f32 %v2687, %v2689
    %v2691 = vadd.f32 %v2687, %v2690
    %vm2692 = vweird.f32 %v2607
    %vm2693 = vweird.f32 %v2687
    %vm2694 = vmor %vm2692, %vm2693
    %v2695 = vsel %vm2694, %v2687, %v2691
    %v2696 = vand.u32 2147483647, %v2607
    %vm2697 = vcmp.eq.f32.partialorder %v2696, 8.507059e+37
    %v2698 = vand.u32 %v2607, 2147483648
    %v2699 = vor.u32 1.1754944e-38, %v2698
    %v2700 = vsel %vm2697, %v2699, %v2695
    %v2701 = vmul.f32 %v2591, %v2700
    %v2702 = vrcp.pop %v2609
    %v2703 = vmul.f32 %v2609, %v2702
    %v2704 = vsub.f32 1.0, %v2703
    %v2705 = vmul.f32 %v2702, %v2704
    %v2706 = vadd.f32 %v2702, %v2705
    %vm2707 = vweird.f32 %v2609
    %vm2708 = vweird.f32 %v2702
    %vm2709 = vmor %vm2707, %vm2708
    %v2710 = vsel %vm2709, %v2702, %v2706
    %v2711 = vand.u32 2147483647, %v2609
    %vm2712 = vcmp.eq.f32.partialorder %v2711, 8.507059e+37
    %v2713 = vand.u32 %v2609, 2147483648
    %v2714 = vor.u32 1.1754944e-38, %v2713
    %v2715 = vsel %vm2712, %v2714, %v2710
    %v2716 = vmul.f32 %v2593, %v2715
    %v2717 = vrcp.pop %v2611
    %v2718 = vmul.f32 %v2611, %v2717
    %v2719 = vsub.f32 1.0, %v2718
    %v2720 = vmul.f32 %v2717, %v2719
    %v2721 = vadd.f32 %v2717, %v2720
    %vm2722 = vweird.f32 %v2611
    %vm2723 = vweird.f32 %v2717
    %vm2724 = vmor %vm2722, %vm2723
    %v2725 = vsel %vm2724, %v2717, %v2721
    %v2726 = vand.u32 2147483647, %v2611
    %vm2727 = vcmp.eq.f32.partialorder %v2726, 8.507059e+37
    %v2728 = vand.u32 %v2611, 2147483648
    %v2729 = vor.u32 1.1754944e-38, %v2728
    %v2730 = vsel %vm2727, %v2729, %v2725
    %v2731 = vmul.f32 %v2595, %v2730
    %2732 = vst [vmem:[#allocation9] sm:$0xff] %v2626
    %2733 = vst [vmem:[#allocation9 + $0x8] sm:$0xff] %v2641
    %2734 = vst [vmem:[#allocation9 + $0x10] sm:$0xff] %v2656
    %2735 = vst [vmem:[#allocation9 + $0x18] sm:$0xff] %v2671
    %2736 = vst [vmem:[#allocation9 + $0x20] sm:$0xff] %v2686
    %2737 = vst [vmem:[#allocation9 + $0x28] sm:$0xff] %v2701
    %2738 = vst [vmem:[#allocation9 + $0x30] sm:$0xff] %v2716
    %2739 = vst [vmem:[#allocation9 + $0x38] sm:$0xff] %v2731
    // Predicated region
    $region50: #{tpu_custom_call.1} parent=1 // pred_check
      _
    $region51: #{tpu_custom_call.1} parent=1 // pred_check_branch
      %2741 = sbr.rel (0) target = $region53
    $region52: #{tpu_custom_call.1} parent=1 // pred_region
      %2743 = vsyncadd [#allocation6], 0
      %s2744 = sshll.u32 [#allocation9], 4
      %s2745 = int_to_ptr.vmem [resolvable:$true] %s2744
      %s2746 = sshll.u32 %s10, 4
      %s2747 = int_to_ptr.hbm [resolvable:$true] %s2746
      %2752 = dma.vmem_to_hbm [thread:$0]  %s2745, 1024, %s2747, [#allocation6], 128, 128, 8
    $region53: #{tpu_custom_call.1} parent=1 // pred_fallthru
      _
    // Predicated region
    $region54: #{tpu_custom_call.1} parent=1 // pred_check
      _
    $region55: #{tpu_custom_call.1} parent=1 // pred_check_branch
      %2754 = sbr.rel (0) target = $region57
    $region56: #{tpu_custom_call.1} parent=1 // pred_region
      %2756 = vsyncadd [#allocation11], 0
      %s2758 = sshll.u32 [#allocation10], 4
      %s2759 = int_to_ptr.vmem [resolvable:$true] %s2758
      %s2760 = sshll.u32 %s11, 4
      %s2761 = int_to_ptr.hbm [resolvable:$true] %s2760
      %2763 = dma.vmem_to_hbm [thread:$0]  %s2759, 128, %s2761, [#allocation11]
    $region57: #{tpu_custom_call.1} parent=1 // pred_fallthru
      _
    // Predicated region
    $region58: #{tpu_custom_call.1} parent=1 // pred_check
      _
    $region59: #{tpu_custom_call.1} parent=1 // pred_check_branch
      %2765 = sbr.rel (0) target = $region61
    $region60: #{tpu_custom_call.1} parent=1 // pred_region
      %2767 = dma.done [#allocation6], 1024
    $region61: #{tpu_custom_call.1} parent=1 // pred_fallthru
      _
    // Predicated region
    $region62: #{tpu_custom_call.1} parent=1 // pred_check
      _
    $region63: #{tpu_custom_call.1} parent=1 // pred_check_branch
      %2769 = sbr.rel (0) target = $region65
    $region64: #{tpu_custom_call.1} parent=1 // pred_region
      %2771 = dma.done [#allocation11], 128
    $region65: #{tpu_custom_call.1} parent=1 // pred_fallthru
      _
    %2772 = vsyncpa [#allocation5], 1
    %2773 = vsyncpa [#allocation8], 1
    %2774 = vsyncpa [#allocation6], 1
    %2775 = vsyncpa [#allocation11], 1

</llo_original>
